<compile_context>
chip_gen: v7x
topology: tpu7x:2x2x1
jax: 0.10.0
libtpu: 0.0.40
codegen_flags: <defaults>
</compile_context>

<pallas_src>
import functools
import math

import jax
import jax.numpy as jnp
from jax import lax
from jax.experimental import pallas as pl
from jax.experimental.pallas import tpu as pltpu

LANE = 128       # TPU lane width (last dim)
SUB = 8          # f32 sublane width
SUB_BF16 = 16    # bf16 sublane packing (node-row pad)


def _round_up(x, m):
    return (x + m - 1) // m * m


# ---------------------------------------------------------------------------
# Kernels
# ---------------------------------------------------------------------------

def _gin_common(meta_ref, src_ref, seg_ref, ea0_ref, ea1_ref,
                h_ref, vn_ref, oh_ref, tbl0_ref, tbl1_ref,
                w1_ref, b1_ref, w2_ref, b2_ref,
                hvn_scr, agg_scr):
    """Shared GIN-layer body.

      hvn = h + onehot @ vn                       (vectorized MXU broadcast)
      agg[d] = sum_{e: dst==d} relu(hvn[src] + bond0[a0] + bond1[a1])
               (dst-sorted segments, register accumulation, 1 store / dst)
      h_new = (hvn + agg) @ W1' + b1' -> relu -> @ W2' + b2'   (BN folded)

    Returns (h_new f32, n_nodes).  hvn stays in VMEM scratch for the caller.
    """
    n_nodes = meta_ref[0]
    d_pad = hvn_scr.shape[1]

    # 1) virtual-node broadcast via one-hot matmul (O(N*G*d), MXU-trivial).
    hvn_scr[...] = (h_ref[...].astype(jnp.float32)
                    + jnp.dot(oh_ref[...], vn_ref[...],
                              preferred_element_type=jnp.float32))

    # 2) neighbor aggregation over dst-sorted edge segments.  The per-dst sum
    #    lives in a register; exactly one VMEM store per destination row, so
    #    there is no loop-carried vst->vld chain through agg_scr.
    agg_scr[...] = jnp.zeros_like(agg_scr)

    def row_body(d, c):
        start = seg_ref[d]
        end = seg_ref[d + 1]

        def edge_body(e, acc):
            s = src_ref[e]
            msg = (hvn_scr[pl.ds(s, 1), :]
                   + tbl0_ref[pl.ds(ea0_ref[e], 1), :]
                   + tbl1_ref[pl.ds(ea1_ref[e], 1), :])
            return acc + jnp.maximum(msg, 0.0)

        acc = lax.fori_loop(start, end, edge_body,
                            jnp.zeros((1, d_pad), jnp.float32))
        agg_scr[pl.ds(d, 1), :] = acc          # single store per dst row
        return c

    lax.fori_loop(0, n_nodes, row_body, 0)

    # 3) GIN MLP on (1+eps)*x + aggr (eps=0); bf16 MXU with f32 accumulation.
    pre = hvn_scr[...] + agg_scr[...]
    t = jnp.dot(pre.astype(jnp.bfloat16), w1_ref[...],
                preferred_element_type=jnp.float32) + b1_ref[...]
    t = jnp.maximum(t, 0.0)
    h_new = jnp.dot(t.astype(jnp.bfloat16), w2_ref[...],
                    preferred_element_type=jnp.float32) + b2_ref[...]
    return h_new, n_nodes


def _gin_mid_kernel(meta_ref, src_ref, seg_ref, ea0_ref, ea1_ref,      # SMEM
                    h_ref, vn_ref, oh_ref, ohT_ref, tbl0_ref, tbl1_ref,
                    w1_ref, b1_ref, w2_ref, b2_ref,
                    vw1_ref, vb1_ref, vw2_ref, vb2_ref,
                    hout_ref, vn_out_ref,                               # outputs
                    hvn_scr, agg_scr):                                  # scratch
    """Non-last GIN layer fused with the virtual-node MLP update."""
    h_new, n_nodes = _gin_common(meta_ref, src_ref, seg_ref, ea0_ref, ea1_ref,
                                 h_ref, vn_ref, oh_ref, tbl0_ref, tbl1_ref,
                                 w1_ref, b1_ref, w2_ref, b2_ref,
                                 hvn_scr, agg_scr)
    h_new = jnp.maximum(h_new, 0.0)            # ReLU on all but last layer
    # Keep padded rows exactly zero so the next layer's one-hot broadcast and
    # pooling see clean zeros (bias terms would otherwise leak into them).
    row_id = lax.broadcasted_iota(jnp.int32, h_new.shape, 0)
    hout_ref[...] = jnp.where(row_id < n_nodes, h_new, 0.0).astype(hout_ref.dtype)

    # Fused virtual-node update:  vn_new = MLP(add_pool(hvn) + vn)
    # (add_pool via the transposed one-hot; hvn never leaves VMEM).
    pooled = jnp.dot(ohT_ref[...], hvn_scr[...],
                     preferred_element_type=jnp.float32) + vn_ref[...]
    t = jnp.dot(pooled.astype(jnp.bfloat16), vw1_ref[...],
                preferred_element_type=jnp.float32) + vb1_ref[...]
    t = jnp.maximum(t, 0.0)
    v = jnp.dot(t.astype(jnp.bfloat16), vw2_ref[...],
                preferred_element_type=jnp.float32) + vb2_ref[...]
    vn_out_ref[...] = jnp.maximum(v, 0.0)


def _gin_last_kernel(meta_ref, src_ref, seg_ref, ea0_ref, ea1_ref,     # SMEM
                     h_ref, vn_ref, oh_ref, ohT_ref, invc_ref,
                     tbl0_ref, tbl1_ref,
                     w1_ref, b1_ref, w2_ref, b2_ref, pw_ref, pb_ref,
                     out_ref,                                           # output
                     hvn_scr, agg_scr):                                 # scratch
    """Last GIN layer fused with mean pooling and the prediction head."""
    h_new, _ = _gin_common(meta_ref, src_ref, seg_ref, ea0_ref, ea1_ref,
                           h_ref, vn_ref, oh_ref, tbl0_ref, tbl1_ref,
                           w1_ref, b1_ref, w2_ref, b2_ref,
                           hvn_scr, agg_scr)
    # No ReLU on the last layer (dropout is identity in eval).
    pooled = jnp.dot(ohT_ref[...], h_new, preferred_element_type=jnp.float32)
    h_graph = pooled * invc_ref[...]           # mean pool (counts guarded >= 1)
    out_ref[...] = jnp.dot(h_graph.astype(jnp.bfloat16), pw_ref[...],
                           preferred_element_type=jnp.float32) + pb_ref[...]


# ---------------------------------------------------------------------------
# pallas_call wrappers
# ---------------------------------------------------------------------------

def _full_spec(shape):
    # Full-array VMEM block (grid is (1,)); scalar-prefetch refs swallowed by *_.
    return pl.BlockSpec(shape, lambda i, *_: (0,) * len(shape))


def _cost_and_vmem(tensors, out_shapes, scratch_f32_elems, flops):
    in_b = sum(int(x.size) * x.dtype.itemsize for x in tensors)
    out_b = sum(math.prod(s.shape) * jnp.dtype(s.dtype).itemsize for s in out_shapes)
    cost = pl.CostEstimate(flops=int(flops), transcendentals=0,
                           bytes_accessed=int(in_b + out_b))
    # double-buffered inputs/outputs + scratch + headroom, capped v7x-safe.
    vmem = 2 * (in_b + out_b) + 4 * scratch_f32_elems + (2 << 20)
    return cost, int(min(vmem, 32 << 20))


def _gin_mid_call(meta, src, seg, ea0, ea1,
                  h, vn, oh, ohT, tbl0, tbl1, w1, b1, w2, b2,
                  vw1, vb1, vw2, vb2):
    n_pad, d_pad = h.shape
    g_pad = vn.shape[0]
    h_pad = w1.shape[1]
    e_pad = src.shape[0]
    tensors = (h, vn, oh, ohT, tbl0, tbl1, w1, b1, w2, b2, vw1, vb1, vw2, vb2)
    out_shape = (jax.ShapeDtypeStruct((n_pad, d_pad), jnp.bfloat16),
                 jax.ShapeDtypeStruct((g_pad, d_pad), jnp.float32))
    flops = (2 * n_pad * g_pad * d_pad                 # vn broadcast
             + 4 * e_pad * d_pad                       # edge messages
             + 4 * n_pad * d_pad * h_pad               # GIN MLP
             + 2 * g_pad * n_pad * d_pad               # add pool
             + 4 * g_pad * d_pad * h_pad)              # VN MLP
    cost, vmem = _cost_and_vmem(tensors, out_shape, 2 * n_pad * d_pad, flops)
    grid_spec = pltpu.PrefetchScalarGridSpec(
        num_scalar_prefetch=5,
        grid=(1,),
        in_specs=[_full_spec(x.shape) for x in tensors],
        out_specs=(_full_spec((n_pad, d_pad)), _full_spec((g_pad, d_pad))),
        scratch_shapes=[pltpu.VMEM((n_pad, d_pad), jnp.float32),
                        pltpu.VMEM((n_pad, d_pad), jnp.float32)],
    )
    return pl.pallas_call(
        _gin_mid_kernel,
        grid_spec=grid_spec,
        out_shape=out_shape,
        compiler_params=pltpu.CompilerParams(
            dimension_semantics=("arbitrary",), vmem_limit_bytes=vmem),
        cost_estimate=cost,
    )(meta, src, seg, ea0, ea1, *tensors)


def _gin_last_call(meta, src, seg, ea0, ea1,
                   h, vn, oh, ohT, invc, tbl0, tbl1, w1, b1, w2, b2, pw, pb):
    n_pad, d_pad = h.shape
    g_pad = vn.shape[0]
    h_pad = w1.shape[1]
    t_pad = pw.shape[1]
    e_pad = src.shape[0]
    tensors = (h, vn, oh, ohT, invc, tbl0, tbl1, w1, b1, w2, b2, pw, pb)
    out_shape = jax.ShapeDtypeStruct((g_pad, t_pad), jnp.float32)
    flops = (2 * n_pad * g_pad * d_pad
             + 4 * e_pad * d_pad
             + 4 * n_pad * d_pad * h_pad
             + 2 * g_pad * n_pad * d_pad
             + 2 * g_pad * d_pad * t_pad)
    cost, vmem = _cost_and_vmem(tensors, (out_shape,), 2 * n_pad * d_pad, flops)
    grid_spec = pltpu.PrefetchScalarGridSpec(
        num_scalar_prefetch=5,
        grid=(1,),
        in_specs=[_full_spec(x.shape) for x in tensors],
        out_specs=_full_spec((g_pad, t_pad)),
        scratch_shapes=[pltpu.VMEM((n_pad, d_pad), jnp.float32),
                        pltpu.VMEM((n_pad, d_pad), jnp.float32)],
    )
    return pl.pallas_call(
        _gin_last_kernel,
        grid_spec=grid_spec,
        out_shape=out_shape,
        compiler_params=pltpu.CompilerParams(
            dimension_semantics=("arbitrary",), vmem_limit_bytes=vmem),
        cost_estimate=cost,
    )(meta, src, seg, ea0, ea1, *tensors)


# ---------------------------------------------------------------------------
# Parameters (raw torch-like init, then BN-fold + lane-pad + bf16 weights)
# ---------------------------------------------------------------------------

def init_params(key, num_layer, emb_dim, num_tasks,
                atom_vocab=10, bond_vocab=6, n_atom_feat=2, n_bond_feat=2):
    keys = iter(jax.random.split(key, 1024))

    def nrm(shape, s=0.1):
        return jax.random.normal(next(keys), shape, jnp.float32) * s

    def bn(d):  # freshly initialized BatchNorm1d running stats / affine
        return {'gamma': jnp.ones((d,), jnp.float32),
                'beta': jnp.zeros((d,), jnp.float32),
                'mean': jnp.zeros((d,), jnp.float32),
                'var': jnp.ones((d,), jnp.float32)}

    params = {
        'atom_emb': [nrm((atom_vocab, emb_dim)) for _ in range(n_atom_feat)],
        'layers': [],
        'vn_mlps': [],
        'pred_W': nrm((emb_dim, num_tasks)),
        'pred_b': jnp.zeros((num_tasks,), jnp.float32),
    }
    for _ in range(num_layer):
        params['layers'].append({
            'bond_emb': [nrm((bond_vocab, emb_dim)) for _ in range(n_bond_feat)],
            'W1': nrm((emb_dim, 2 * emb_dim)),
            'b1': jnp.zeros((2 * emb_dim,), jnp.float32),
            'bn1': bn(2 * emb_dim),                 # BN inside the GIN MLP
            'W2': nrm((2 * emb_dim, emb_dim)),
            'b2': jnp.zeros((emb_dim,), jnp.float32),
            'bn2': bn(emb_dim),                     # per-layer BN after the conv
        })
    for _ in range(num_layer - 1):
        params['vn_mlps'].append({
            'W1': nrm((emb_dim, 2 * emb_dim)),
            'b1': jnp.zeros((2 * emb_dim,), jnp.float32),
            'bn1': bn(2 * emb_dim),
            'W2': nrm((2 * emb_dim, emb_dim)),
            'b2': jnp.zeros((emb_dim,), jnp.float32),
            'bn2': bn(emb_dim),
        })
    return params


def _fold_bn(W, b, bn_p, eps=1e-5):
    scale = bn_p['gamma'] / jnp.sqrt(bn_p['var'] + eps)
    return W * scale[None, :], (b - bn_p['mean']) * scale + bn_p['beta']


def _pad_w(W, rows, cols):   # zero-pad weights, cast to bf16 for the MXU
    out = jnp.zeros((rows, cols), jnp.float32).at[:W.shape[0], :W.shape[1]].set(W)
    return out.astype(jnp.bfloat16)


def _pad_b(b, cols):
    return jnp.zeros((1, cols), jnp.float32).at[0, :b.shape[0]].set(b)


def _pad_table(tbl, cols):   # lane-pad only (rows gathered by XLA)
    return jnp.zeros((tbl.shape[0], cols), jnp.float32).at[:, :tbl.shape[1]].set(tbl)


def _pad_rows(tbl, rows, cols):  # row + lane pad, f32 (bond tables live in VMEM)
    return jnp.zeros((rows, cols), jnp.float32).at[:tbl.shape[0], :tbl.shape[1]].set(tbl)


def prepare_params(raw, emb_dim):
    """Fold eval-mode BatchNorm into the Linears, pad lanes to 128, bf16 weights."""
    d_p = _round_up(emb_dim, LANE)
    h_p = _round_up(2 * emb_dim, LANE)
    t_p = _round_up(raw['pred_W'].shape[1], LANE)

    def mlp(p):
        W1, b1 = _fold_bn(p['W1'], p['b1'], p['bn1'])
        W2, b2 = _fold_bn(p['W2'], p['b2'], p['bn2'])
        return {'W1': _pad_w(W1, d_p, h_p), 'b1': _pad_b(b1, h_p),
                'W2': _pad_w(W2, h_p, d_p), 'b2': _pad_b(b2, d_p)}

    pp = {
        'atom_emb': [_pad_table(t, d_p) for t in raw['atom_emb']],
        'layers': [],
        'vn_mlps': [mlp(p) for p in raw['vn_mlps']],
        'pred_W': _pad_w(raw['pred_W'], d_p, t_p),
        'pred_b': _pad_b(raw['pred_b'], t_p),
    }
    for p in raw['layers']:
        lp = mlp(p)
        v_p = _round_up(p['bond_emb'][0].shape[0], SUB)
        lp['bond0'] = _pad_rows(p['bond_emb'][0], v_p, d_p)
        lp['bond1'] = _pad_rows(p['bond_emb'][1], v_p, d_p)
        pp['layers'].append(lp)
    return pp


# ---------------------------------------------------------------------------
# Forward pass (GNN.forward: gnn_node -> mean pool -> linear head)
# ---------------------------------------------------------------------------

@functools.partial(jax.jit, static_argnames=("num_graphs", "num_tasks"))
def gnn_forward(pp, node_feat, edge_index, edge_attr, batch, num_graphs, num_tasks):
    num_layer = len(pp['layers'])
    n = node_feat.shape[0]
    e = edge_attr.shape[0]
    d_p = pp['atom_emb'][0].shape[1]
    n_pad = _round_up(max(n, SUB_BF16), SUB_BF16)
    e_pad = _round_up(max(e, SUB), SUB)
    g_pad = _round_up(max(num_graphs, SUB), SUB)

    src = edge_index[0].astype(jnp.int32)
    dst = edge_index[1].astype(jnp.int32)
    batch = batch.astype(jnp.int32)

    # Pre-sort edges by destination (XLA glue, once per batch): contiguous
    # per-dst segments let the kernel accumulate in registers, one store/dst.
    perm = jnp.argsort(dst)
    dst_sorted = dst[perm]
    src_sorted = jnp.zeros((e_pad,), jnp.int32).at[:e].set(src[perm])
    seg_off = jnp.searchsorted(
        dst_sorted, jnp.arange(n_pad + 1, dtype=jnp.int32)).astype(jnp.int32)
    ea0 = jnp.zeros((e_pad,), jnp.int32).at[:e].set(edge_attr[perm, 0].astype(jnp.int32))
    ea1 = jnp.zeros((e_pad,), jnp.int32).at[:e].set(edge_attr[perm, 1].astype(jnp.int32))
    meta = jnp.array([n, e], jnp.int32)

    # Graph-membership one-hot (N_pad x G_pad, G small): vn broadcast and graph
    # pooling become tiny MXU matmuls instead of serial per-node loops.
    rows = jnp.arange(n_pad)
    batch_p = jnp.zeros((n_pad,), jnp.int32).at[:n].set(batch)
    onehot = ((batch_p[:, None] == jnp.arange(g_pad)[None, :])
              & (rows[:, None] < n)).astype(jnp.float32)       # (n_pad, g_pad)
    onehot_T = onehot.T                                         # (g_pad, n_pad)
    counts = jnp.sum(onehot, axis=0)                            # (g_pad,)
    invc = ((1.0 / jnp.maximum(counts, 1.0))[:, None]
            * jnp.ones((g_pad, d_p), jnp.float32))              # mean-pool scale

    # Atom encoder: sum of per-feature embedding lookups (XLA gather glue).
    h = jnp.zeros((n, d_p), jnp.float32)
    for f, tbl in enumerate(pp['atom_emb']):
        h = h + tbl[node_feat[:, f]]
    h = jnp.zeros((n_pad, d_p), jnp.bfloat16).at[:n].set(h.astype(jnp.bfloat16))

    # Virtual-node embedding: nn.Embedding(1, emb) initialized to zero.
    vn = jnp.zeros((g_pad, d_p), jnp.float32)

    out = None
    for layer, lp in enumerate(pp['layers']):
        if layer < num_layer - 1:
            vp = pp['vn_mlps'][layer]
            h, vn = _gin_mid_call(meta, src_sorted, seg_off, ea0, ea1,
                                  h, vn, onehot, onehot_T,
                                  lp['bond0'], lp['bond1'],
                                  lp['W1'], lp['b1'], lp['W2'], lp['b2'],
                                  vp['W1'], vp['b1'], vp['W2'], vp['b2'])
        else:
            # Last layer: no ReLU, no VN update; mean-pool + head fused in.
            out = _gin_last_call(meta, src_sorted, seg_off, ea0, ea1,
                                 h, vn, onehot, onehot_T, invc,
                                 lp['bond0'], lp['bond1'],
                                 lp['W1'], lp['b1'], lp['W2'], lp['b2'],
                                 pp['pred_W'], pp['pred_b'])
    return out[:num_graphs, :num_tasks]


if __name__ == "__main__":
    key = jax.random.PRNGKey(0)
    num_layer, emb_dim, num_tasks = 3, 32, 3
    atom_vocab, bond_vocab = 10, 6

    # Small batched graph: graph 0 = 7-node ring, graph 1 = 5-node ring.
    def ring_edges(start, nn):
        s = [start + i for i in range(nn)]
        d = [start + (i + 1) % nn for i in range(nn)]
        return list(zip(s, d)) + list(zip(d, s))

    edges = ring_edges(0, 7) + ring_edges(7, 5)
    edge_index = jnp.array(edges, jnp.int32).T                  # (2, E)
    n_nodes, n_edges = 12, edge_index.shape[1]
    batch = jnp.array([0] * 7 + [1] * 5, jnp.int32)
    num_graphs = 2

    kp, ka, kb = jax.random.split(key, 3)
    node_feat = jax.random.randint(ka, (n_nodes, 2), 0, atom_vocab, dtype=jnp.int32)
    edge_attr = jax.random.randint(kb, (n_edges, 2), 0, bond_vocab, dtype=jnp.int32)

    raw = init_params(kp, num_layer, emb_dim, num_tasks,
                      atom_vocab=atom_vocab, bond_vocab=bond_vocab)
    pp = prepare_params(raw, emb_dim)

    out = gnn_forward(pp, node_feat, edge_index, edge_attr, batch,
                      num_graphs=num_graphs, num_tasks=num_tasks)
    out = jax.block_until_ready(out)
    assert out.shape == (num_graphs, num_tasks)
    assert bool(jnp.all(jnp.isfinite(out)))
    print("KERNEL_OK")
</pallas_src>

<mosaic_0001>
module attributes {stable_mosaic.version = 11 : i64} {
  func.func @_gin_mid_kernel(%arg0: i32, %arg1: memref<2xi32, #tpu.memory_space<smem>>, %arg2: memref<24xi32, #tpu.memory_space<smem>>, %arg3: memref<17xi32, #tpu.memory_space<smem>>, %arg4: memref<24xi32, #tpu.memory_space<smem>>, %arg5: memref<24xi32, #tpu.memory_space<smem>>, %arg6: memref<16x128xbf16, #tpu.memory_space<vmem>>, %arg7: memref<8x128xf32, #tpu.memory_space<vmem>>, %arg8: memref<16x8xf32, #tpu.memory_space<vmem>>, %arg9: memref<8x16xf32, #tpu.memory_space<vmem>>, %arg10: memref<8x128xf32, #tpu.memory_space<vmem>>, %arg11: memref<8x128xf32, #tpu.memory_space<vmem>>, %arg12: memref<128x128xbf16, #tpu.memory_space<vmem>>, %arg13: memref<1x128xf32, #tpu.memory_space<vmem>>, %arg14: memref<128x128xbf16, #tpu.memory_space<vmem>>, %arg15: memref<1x128xf32, #tpu.memory_space<vmem>>, %arg16: memref<128x128xbf16, #tpu.memory_space<vmem>>, %arg17: memref<1x128xf32, #tpu.memory_space<vmem>>, %arg18: memref<128x128xbf16, #tpu.memory_space<vmem>>, %arg19: memref<1x128xf32, #tpu.memory_space<vmem>>, %arg20: memref<16x128xbf16, #tpu.memory_space<vmem>>, %arg21: memref<8x128xf32, #tpu.memory_space<vmem>>, %arg22: memref<16x128xf32, #tpu.memory_space<vmem>>, %arg23: memref<16x128xf32, #tpu.memory_space<vmem>>) attributes {dimension_semantics = [#tpu.dimension_semantics<arbitrary>], iteration_bounds = array<i64: 1>, scalar_prefetch = 5 : i64, scratch_operands = 2 : i64, tpu.core_type = #tpu.core_type<tc>, window_params = [{pipeline_mode = #tpu.pipeline_mode<synchronous>, transform_indices = @transform_0, window_bounds = array<i64: 16, 128>}, {pipeline_mode = #tpu.pipeline_mode<synchronous>, transform_indices = @transform_1, window_bounds = array<i64: 8, 128>}, {pipeline_mode = #tpu.pipeline_mode<synchronous>, transform_indices = @transform_2, window_bounds = array<i64: 16, 8>}, {pipeline_mode = #tpu.pipeline_mode<synchronous>, transform_indices = @transform_3, window_bounds = array<i64: 8, 16>}, {pipeline_mode = #tpu.pipeline_mode<synchronous>, transform_indices = @transform_4, window_bounds = array<i64: 8, 128>}, {pipeline_mode = #tpu.pipeline_mode<synchronous>, transform_indices = @transform_5, window_bounds = array<i64: 8, 128>}, {pipeline_mode = #tpu.pipeline_mode<synchronous>, transform_indices = @transform_6, window_bounds = array<i64: 128, 128>}, {pipeline_mode = #tpu.pipeline_mode<synchronous>, transform_indices = @transform_7, window_bounds = array<i64: 1, 128>}, {pipeline_mode = #tpu.pipeline_mode<synchronous>, transform_indices = @transform_8, window_bounds = array<i64: 128, 128>}, {pipeline_mode = #tpu.pipeline_mode<synchronous>, transform_indices = @transform_9, window_bounds = array<i64: 1, 128>}, {pipeline_mode = #tpu.pipeline_mode<synchronous>, transform_indices = @transform_10, window_bounds = array<i64: 128, 128>}, {pipeline_mode = #tpu.pipeline_mode<synchronous>, transform_indices = @transform_11, window_bounds = array<i64: 1, 128>}, {pipeline_mode = #tpu.pipeline_mode<synchronous>, transform_indices = @transform_12, window_bounds = array<i64: 128, 128>}, {pipeline_mode = #tpu.pipeline_mode<synchronous>, transform_indices = @transform_13, window_bounds = array<i64: 1, 128>}, {pipeline_mode = #tpu.pipeline_mode<synchronous>, transform_indices = @transform_14, window_bounds = array<i64: 16, 128>}, {pipeline_mode = #tpu.pipeline_mode<synchronous>, transform_indices = @transform_15, window_bounds = array<i64: 8, 128>}]} {
    %c0 = arith.constant 0 : index
    %0 = memref.load %arg1[%c0] : memref<2xi32, #tpu.memory_space<smem>>
    %c0_0 = arith.constant 0 : index
    %c0_1 = arith.constant 0 : index
    %1 = vector.load %arg6[%c0_0, %c0_1] : memref<16x128xbf16, #tpu.memory_space<vmem>>, vector<16x128xbf16>
    %2 = arith.extf %1 : vector<16x128xbf16> to vector<16x128xf32>
    %c0_2 = arith.constant 0 : index
    %c0_3 = arith.constant 0 : index
    %3 = vector.load %arg8[%c0_2, %c0_3] : memref<16x8xf32, #tpu.memory_space<vmem>>, vector<16x8xf32>
    %c0_4 = arith.constant 0 : index
    %c0_5 = arith.constant 0 : index
    %4 = vector.load %arg7[%c0_4, %c0_5] : memref<8x128xf32, #tpu.memory_space<vmem>>, vector<8x128xf32>
    %cst = arith.constant dense<0.000000e+00> : vector<16x128xf32>
    %5 = tpu.matmul %3, %4, %cst {dimension_numbers = #tpu.dot_dimension_numbers<[1], [0], [0], [1], [0, 0, 1, 1], [], []>} : vector<16x8xf32>, vector<8x128xf32>, vector<16x128xf32> -> vector<16x128xf32>
    %6 = arith.addf %2, %5 : vector<16x128xf32>
    %c0_6 = arith.constant 0 : index
    %c0_7 = arith.constant 0 : index
    %7 = vector.load %arg22[%c0_6, %c0_7] : memref<16x128xf32, #tpu.memory_space<vmem>>, vector<16x128xf32>
    tpu.vector_store %arg22[%c0_6, %c0_7], %6 {strides = array<i32>} : memref<16x128xf32, #tpu.memory_space<vmem>>, vector<16x128xf32>,
    %cst_8 = arith.constant 0.000000e+00 : f32
    %8 = vector.broadcast %cst_8 : f32 to vector<16x128xf32>
    %c0_9 = arith.constant 0 : index
    %c0_10 = arith.constant 0 : index
    %9 = vector.load %arg23[%c0_9, %c0_10] : memref<16x128xf32, #tpu.memory_space<vmem>>, vector<16x128xf32>
    tpu.vector_store %arg23[%c0_9, %c0_10], %8 {strides = array<i32>} : memref<16x128xf32, #tpu.memory_space<vmem>>, vector<16x128xf32>,
    %c0_i32 = arith.constant 0 : i32
    %c0_i32_11 = arith.constant 0 : i32
    %10 = arith.subi %0, %c0_i32_11 : i32
    %11 = arith.addi %c0_i32_11, %10 : i32
    %c1_i32 = arith.constant 1 : i32
    scf.for %arg24 = %c0_i32_11 to %11 step %c1_i32  : i32 {
      %60 = arith.index_cast %arg24 : i32 to index
      %61 = memref.load %arg3[%60] : memref<17xi32, #tpu.memory_space<smem>>
      %c1_i32_52 = arith.constant 1 : i32
      %62 = arith.addi %arg24, %c1_i32_52 : i32
      %63 = arith.index_cast %62 : i32 to index
      %64 = memref.load %arg3[%63] : memref<17xi32, #tpu.memory_space<smem>>
      %cst_53 = arith.constant 0.000000e+00 : f32
      %65 = vector.broadcast %cst_53 : f32 to vector<1x128xf32>
      %66 = arith.subi %64, %61 : i32
      %67 = arith.addi %61, %66 : i32
      %c1_i32_54 = arith.constant 1 : i32
      %68 = scf.for %arg25 = %61 to %67 step %c1_i32_54 iter_args(%arg26 = %65) -> (vector<1x128xf32>)  : i32 {
        %71 = arith.index_cast %arg25 : i32 to index
        %72 = memref.load %arg2[%71] : memref<24xi32, #tpu.memory_space<smem>>
        %73 = arith.index_cast %72 : i32 to index
        %c0_56 = arith.constant 0 : index
        %74 = vector.load %arg22[%73, %c0_56] : memref<16x128xf32, #tpu.memory_space<vmem>>, vector<1x128xf32>
        %75 = arith.index_cast %arg25 : i32 to index
        %76 = memref.load %arg4[%75] : memref<24xi32, #tpu.memory_space<smem>>
        %77 = arith.index_cast %76 : i32 to index
        %c0_57 = arith.constant 0 : index
        %78 = vector.load %arg10[%77, %c0_57] : memref<8x128xf32, #tpu.memory_space<vmem>>, vector<1x128xf32>
        %79 = arith.addf %74, %78 : vector<1x128xf32>
        %80 = arith.index_cast %arg25 : i32 to index
        %81 = memref.load %arg5[%80] : memref<24xi32, #tpu.memory_space<smem>>
        %82 = arith.index_cast %81 : i32 to index
        %c0_58 = arith.constant 0 : index
        %83 = vector.load %arg11[%82, %c0_58] : memref<8x128xf32, #tpu.memory_space<vmem>>, vector<1x128xf32>
        %84 = arith.addf %79, %83 : vector<1x128xf32>
        %cst_59 = arith.constant 0.000000e+00 : f32
        %85 = vector.broadcast %cst_59 : f32 to vector<1x128xf32>
        %86 = arith.maximumf %84, %85 : vector<1x128xf32>
        %87 = arith.addf %arg26, %86 : vector<1x128xf32>
        scf.yield %87 : vector<1x128xf32>
      }
      %69 = arith.index_cast %arg24 : i32 to index
      %c0_55 = arith.constant 0 : index
      %70 = vector.load %arg23[%69, %c0_55] : memref<16x128xf32, #tpu.memory_space<vmem>>, vector<1x128xf32>
      tpu.vector_store %arg23[%69, %c0_55], %68 {strides = array<i32>} : memref<16x128xf32, #tpu.memory_space<vmem>>, vector<1x128xf32>,
    }
    %c0_12 = arith.constant 0 : index
    %c0_13 = arith.constant 0 : index
    %12 = vector.load %arg22[%c0_12, %c0_13] : memref<16x128xf32, #tpu.memory_space<vmem>>, vector<16x128xf32>
    %c0_14 = arith.constant 0 : index
    %c0_15 = arith.constant 0 : index
    %13 = vector.load %arg23[%c0_14, %c0_15] : memref<16x128xf32, #tpu.memory_space<vmem>>, vector<16x128xf32>
    %14 = arith.addf %12, %13 : vector<16x128xf32>
    %15 = arith.truncf %14 : vector<16x128xf32> to vector<16x128xbf16>
    %c0_16 = arith.constant 0 : index
    %c0_17 = arith.constant 0 : index
    %16 = vector.load %arg12[%c0_16, %c0_17] : memref<128x128xbf16, #tpu.memory_space<vmem>>, vector<128x128xbf16>
    %cst_18 = arith.constant dense<0.000000e+00> : vector<16x128xf32>
    %17 = tpu.matmul %15, %16, %cst_18 {dimension_numbers = #tpu.dot_dimension_numbers<[1], [0], [0], [1], [0, 0, 1, 1], [], []>} : vector<16x128xbf16>, vector<128x128xbf16>, vector<16x128xf32> -> vector<16x128xf32>
    %c0_19 = arith.constant 0 : index
    %c0_20 = arith.constant 0 : index
    %18 = vector.load %arg13[%c0_19, %c0_20] : memref<1x128xf32, #tpu.memory_space<vmem>>, vector<1x128xf32>
    %19 = vector.broadcast %18 : vector<1x128xf32> to vector<16x128xf32>
    %20 = arith.addf %17, %19 : vector<16x128xf32>
    %cst_21 = arith.constant 0.000000e+00 : f32
    %21 = vector.broadcast %cst_21 : f32 to vector<16x128xf32>
    %22 = arith.maximumf %20, %21 : vector<16x128xf32>
    %23 = arith.truncf %22 : vector<16x128xf32> to vector<16x128xbf16>
    %c0_22 = arith.constant 0 : index
    %c0_23 = arith.constant 0 : index
    %24 = vector.load %arg14[%c0_22, %c0_23] : memref<128x128xbf16, #tpu.memory_space<vmem>>, vector<128x128xbf16>
    %cst_24 = arith.constant dense<0.000000e+00> : vector<16x128xf32>
    %25 = tpu.matmul %23, %24, %cst_24 {dimension_numbers = #tpu.dot_dimension_numbers<[1], [0], [0], [1], [0, 0, 1, 1], [], []>} : vector<16x128xbf16>, vector<128x128xbf16>, vector<16x128xf32> -> vector<16x128xf32>
    %c0_25 = arith.constant 0 : index
    %c0_26 = arith.constant 0 : index
    %26 = vector.load %arg15[%c0_25, %c0_26] : memref<1x128xf32, #tpu.memory_space<vmem>>, vector<1x128xf32>
    %27 = vector.broadcast %26 : vector<1x128xf32> to vector<16x128xf32>
    %28 = arith.addf %25, %27 : vector<16x128xf32>
    %cst_27 = arith.constant 0.000000e+00 : f32
    %29 = vector.broadcast %cst_27 : f32 to vector<16x128xf32>
    %30 = arith.maximumf %28, %29 : vector<16x128xf32>
    %31 = tpu.iota {dimensions = array<i32: 0>} : vector<16x128xi32>
    %32 = vector.broadcast %0 : i32 to vector<16x128xi32>
    %33 = arith.cmpi slt, %31, %32 : vector<16x128xi32>
    %cst_28 = arith.constant 0.000000e+00 : f32
    %34 = vector.broadcast %cst_28 : f32 to vector<16x128xf32>
    %35 = arith.select %33, %30, %34 : vector<16x128xi1>, vector<16x128xf32>
    %36 = arith.truncf %35 : vector<16x128xf32> to vector<16x128xbf16>
    %c0_29 = arith.constant 0 : index
    %c0_30 = arith.constant 0 : index
    %37 = vector.load %arg20[%c0_29, %c0_30] : memref<16x128xbf16, #tpu.memory_space<vmem>>, vector<16x128xbf16>
    tpu.vector_store %arg20[%c0_29, %c0_30], %36 {strides = array<i32>} : memref<16x128xbf16, #tpu.memory_space<vmem>>, vector<16x128xbf16>,
    %c0_31 = arith.constant 0 : index
    %c0_32 = arith.constant 0 : index
    %38 = vector.load %arg9[%c0_31, %c0_32] : memref<8x16xf32, #tpu.memory_space<vmem>>, vector<8x16xf32>
    %c0_33 = arith.constant 0 : index
    %c0_34 = arith.constant 0 : index
    %39 = vector.load %arg22[%c0_33, %c0_34] : memref<16x128xf32, #tpu.memory_space<vmem>>, vector<16x128xf32>
    %cst_35 = arith.constant dense<0.000000e+00> : vector<8x128xf32>
    %40 = tpu.matmul %38, %39, %cst_35 {dimension_numbers = #tpu.dot_dimension_numbers<[1], [0], [0], [1], [0, 0, 1, 1], [], []>} : vector<8x16xf32>, vector<16x128xf32>, vector<8x128xf32> -> vector<8x128xf32>
    %c0_36 = arith.constant 0 : index
    %c0_37 = arith.constant 0 : index
    %41 = vector.load %arg7[%c0_36, %c0_37] : memref<8x128xf32, #tpu.memory_space<vmem>>, vector<8x128xf32>
    %42 = arith.addf %40, %41 : vector<8x128xf32>
    %43 = arith.truncf %42 : vector<8x128xf32> to vector<8x128xbf16>
    %c0_38 = arith.constant 0 : index
    %c0_39 = arith.constant 0 : index
    %44 = vector.load %arg16[%c0_38, %c0_39] : memref<128x128xbf16, #tpu.memory_space<vmem>>, vector<128x128xbf16>
    %cst_40 = arith.constant dense<0.000000e+00> : vector<8x128xf32>
    %45 = tpu.matmul %43, %44, %cst_40 {dimension_numbers = #tpu.dot_dimension_numbers<[1], [0], [0], [1], [0, 0, 1, 1], [], []>} : vector<8x128xbf16>, vector<128x128xbf16>, vector<8x128xf32> -> vector<8x128xf32>
    %c0_41 = arith.constant 0 : index
    %c0_42 = arith.constant 0 : index
    %46 = vector.load %arg17[%c0_41, %c0_42] : memref<1x128xf32, #tpu.memory_space<vmem>>, vector<1x128xf32>
    %47 = vector.broadcast %46 : vector<1x128xf32> to vector<8x128xf32>
    %48 = arith.addf %45, %47 : vector<8x128xf32>
    %cst_43 = arith.constant 0.000000e+00 : f32
    %49 = vector.broadcast %cst_43 : f32 to vector<8x128xf32>
    %50 = arith.maximumf %48, %49 : vector<8x128xf32>
    %51 = arith.truncf %50 : vector<8x128xf32> to vector<8x128xbf16>
    %c0_44 = arith.constant 0 : index
    %c0_45 = arith.constant 0 : index
    %52 = vector.load %arg18[%c0_44, %c0_45] : memref<128x128xbf16, #tpu.memory_space<vmem>>, vector<128x128xbf16>
    %cst_46 = arith.constant dense<0.000000e+00> : vector<8x128xf32>
    %53 = tpu.matmul %51, %52, %cst_46 {dimension_numbers = #tpu.dot_dimension_numbers<[1], [0], [0], [1], [0, 0, 1, 1], [], []>} : vector<8x128xbf16>, vector<128x128xbf16>, vector<8x128xf32> -> vector<8x128xf32>
    %c0_47 = arith.constant 0 : index
    %c0_48 = arith.constant 0 : index
    %54 = vector.load %arg19[%c0_47, %c0_48] : memref<1x128xf32, #tpu.memory_space<vmem>>, vector<1x128xf32>
    %55 = vector.broadcast %54 : vector<1x128xf32> to vector<8x128xf32>
    %56 = arith.addf %53, %55 : vector<8x128xf32>
    %cst_49 = arith.constant 0.000000e+00 : f32
    %57 = vector.broadcast %cst_49 : f32 to vector<8x128xf32>
    %58 = arith.maximumf %56, %57 : vector<8x128xf32>
    %c0_50 = arith.constant 0 : index
    %c0_51 = arith.constant 0 : index
    %59 = vector.load %arg21[%c0_50, %c0_51] : memref<8x128xf32, #tpu.memory_space<vmem>>, vector<8x128xf32>
    tpu.vector_store %arg21[%c0_50, %c0_51], %58 {strides = array<i32>} : memref<8x128xf32, #tpu.memory_space<vmem>>, vector<8x128xf32>,
    return
  }
  func.func @transform_0(%arg0: i32, %arg1: memref<2xi32, #tpu.memory_space<smem>>, %arg2: memref<24xi32, #tpu.memory_space<smem>>, %arg3: memref<17xi32, #tpu.memory_space<smem>>, %arg4: memref<24xi32, #tpu.memory_space<smem>>, %arg5: memref<24xi32, #tpu.memory_space<smem>>) -> (i32, i32) {
    %c0_i32 = arith.constant 0 : i32
    %c0_i32_0 = arith.constant 0 : i32
    %c0_i32_1 = arith.constant 0 : i32
    return %c0_i32, %c0_i32_0 : i32, i32
  }
  func.func @transform_1(%arg0: i32, %arg1: memref<2xi32, #tpu.memory_space<smem>>, %arg2: memref<24xi32, #tpu.memory_space<smem>>, %arg3: memref<17xi32, #tpu.memory_space<smem>>, %arg4: memref<24xi32, #tpu.memory_space<smem>>, %arg5: memref<24xi32, #tpu.memory_space<smem>>) -> (i32, i32) {
    %c0_i32 = arith.constant 0 : i32
    %c0_i32_0 = arith.constant 0 : i32
    %c0_i32_1 = arith.constant 0 : i32
    return %c0_i32, %c0_i32_0 : i32, i32
  }
  func.func @transform_2(%arg0: i32, %arg1: memref<2xi32, #tpu.memory_space<smem>>, %arg2: memref<24xi32, #tpu.memory_space<smem>>, %arg3: memref<17xi32, #tpu.memory_space<smem>>, %arg4: memref<24xi32, #tpu.memory_space<smem>>, %arg5: memref<24xi32, #tpu.memory_space<smem>>) -> (i32, i32) {
    %c0_i32 = arith.constant 0 : i32
    %c0_i32_0 = arith.constant 0 : i32
    %c0_i32_1 = arith.constant 0 : i32
    return %c0_i32, %c0_i32_0 : i32, i32
  }
  func.func @transform_3(%arg0: i32, %arg1: memref<2xi32, #tpu.memory_space<smem>>, %arg2: memref<24xi32, #tpu.memory_space<smem>>, %arg3: memref<17xi32, #tpu.memory_space<smem>>, %arg4: memref<24xi32, #tpu.memory_space<smem>>, %arg5: memref<24xi32, #tpu.memory_space<smem>>) -> (i32, i32) {
    %c0_i32 = arith.constant 0 : i32
    %c0_i32_0 = arith.constant 0 : i32
    %c0_i32_1 = arith.constant 0 : i32
    return %c0_i32, %c0_i32_0 : i32, i32
  }
  func.func @transform_4(%arg0: i32, %arg1: memref<2xi32, #tpu.memory_space<smem>>, %arg2: memref<24xi32, #tpu.memory_space<smem>>, %arg3: memref<17xi32, #tpu.memory_space<smem>>, %arg4: memref<24xi32, #tpu.memory_space<smem>>, %arg5: memref<24xi32, #tpu.memory_space<smem>>) -> (i32, i32) {
    %c0_i32 = arith.constant 0 : i32
    %c0_i32_0 = arith.constant 0 : i32
    %c0_i32_1 = arith.constant 0 : i32
    return %c0_i32, %c0_i32_0 : i32, i32
  }
  func.func @transform_5(%arg0: i32, %arg1: memref<2xi32, #tpu.memory_space<smem>>, %arg2: memref<24xi32, #tpu.memory_space<smem>>, %arg3: memref<17xi32, #tpu.memory_space<smem>>, %arg4: memref<24xi32, #tpu.memory_space<smem>>, %arg5: memref<24xi32, #tpu.memory_space<smem>>) -> (i32, i32) {
    %c0_i32 = arith.constant 0 : i32
    %c0_i32_0 = arith.constant 0 : i32
    %c0_i32_1 = arith.constant 0 : i32
    return %c0_i32, %c0_i32_0 : i32, i32
  }
  func.func @transform_6(%arg0: i32, %arg1: memref<2xi32, #tpu.memory_space<smem>>, %arg2: memref<24xi32, #tpu.memory_space<smem>>, %arg3: memref<17xi32, #tpu.memory_space<smem>>, %arg4: memref<24xi32, #tpu.memory_space<smem>>, %arg5: memref<24xi32, #tpu.memory_space<smem>>) -> (i32, i32) {
    %c0_i32 = arith.constant 0 : i32
    %c0_i32_0 = arith.constant 0 : i32
    %c0_i32_1 = arith.constant 0 : i32
    return %c0_i32, %c0_i32_0 : i32, i32
  }
  func.func @transform_7(%arg0: i32, %arg1: memref<2xi32, #tpu.memory_space<smem>>, %arg2: memref<24xi32, #tpu.memory_space<smem>>, %arg3: memref<17xi32, #tpu.memory_space<smem>>, %arg4: memref<24xi32, #tpu.memory_space<smem>>, %arg5: memref<24xi32, #tpu.memory_space<smem>>) -> (i32, i32) {
    %c0_i32 = arith.constant 0 : i32
    %c0_i32_0 = arith.constant 0 : i32
    %c0_i32_1 = arith.constant 0 : i32
    return %c0_i32, %c0_i32_0 : i32, i32
  }
  func.func @transform_8(%arg0: i32, %arg1: memref<2xi32, #tpu.memory_space<smem>>, %arg2: memref<24xi32, #tpu.memory_space<smem>>, %arg3: memref<17xi32, #tpu.memory_space<smem>>, %arg4: memref<24xi32, #tpu.memory_space<smem>>, %arg5: memref<24xi32, #tpu.memory_space<smem>>) -> (i32, i32) {
    %c0_i32 = arith.constant 0 : i32
    %c0_i32_0 = arith.constant 0 : i32
    %c0_i32_1 = arith.constant 0 : i32
    return %c0_i32, %c0_i32_0 : i32, i32
  }
  func.func @transform_9(%arg0: i32, %arg1: memref<2xi32, #tpu.memory_space<smem>>, %arg2: memref<24xi32, #tpu.memory_space<smem>>, %arg3: memref<17xi32, #tpu.memory_space<smem>>, %arg4: memref<24xi32, #tpu.memory_space<smem>>, %arg5: memref<24xi32, #tpu.memory_space<smem>>) -> (i32, i32) {
    %c0_i32 = arith.constant 0 : i32
    %c0_i32_0 = arith.constant 0 : i32
    %c0_i32_1 = arith.constant 0 : i32
    return %c0_i32, %c0_i32_0 : i32, i32
  }
  func.func @transform_10(%arg0: i32, %arg1: memref<2xi32, #tpu.memory_space<smem>>, %arg2: memref<24xi32, #tpu.memory_space<smem>>, %arg3: memref<17xi32, #tpu.memory_space<smem>>, %arg4: memref<24xi32, #tpu.memory_space<smem>>, %arg5: memref<24xi32, #tpu.memory_space<smem>>) -> (i32, i32) {
    %c0_i32 = arith.constant 0 : i32
    %c0_i32_0 = arith.constant 0 : i32
    %c0_i32_1 = arith.constant 0 : i32
    return %c0_i32, %c0_i32_0 : i32, i32
  }
  func.func @transform_11(%arg0: i32, %arg1: memref<2xi32, #tpu.memory_space<smem>>, %arg2: memref<24xi32, #tpu.memory_space<smem>>, %arg3: memref<17xi32, #tpu.memory_space<smem>>, %arg4: memref<24xi32, #tpu.memory_space<smem>>, %arg5: memref<24xi32, #tpu.memory_space<smem>>) -> (i32, i32) {
    %c0_i32 = arith.constant 0 : i32
    %c0_i32_0 = arith.constant 0 : i32
    %c0_i32_1 = arith.constant 0 : i32
    return %c0_i32, %c0_i32_0 : i32, i32
  }
  func.func @transform_12(%arg0: i32, %arg1: memref<2xi32, #tpu.memory_space<smem>>, %arg2: memref<24xi32, #tpu.memory_space<smem>>, %arg3: memref<17xi32, #tpu.memory_space<smem>>, %arg4: memref<24xi32, #tpu.memory_space<smem>>, %arg5: memref<24xi32, #tpu.memory_space<smem>>) -> (i32, i32) {
    %c0_i32 = arith.constant 0 : i32
    %c0_i32_0 = arith.constant 0 : i32
    %c0_i32_1 = arith.constant 0 : i32
    return %c0_i32, %c0_i32_0 : i32, i32
  }
  func.func @transform_13(%arg0: i32, %arg1: memref<2xi32, #tpu.memory_space<smem>>, %arg2: memref<24xi32, #tpu.memory_space<smem>>, %arg3: memref<17xi32, #tpu.memory_space<smem>>, %arg4: memref<24xi32, #tpu.memory_space<smem>>, %arg5: memref<24xi32, #tpu.memory_space<smem>>) -> (i32, i32) {
    %c0_i32 = arith.constant 0 : i32
    %c0_i32_0 = arith.constant 0 : i32
    %c0_i32_1 = arith.constant 0 : i32
    return %c0_i32, %c0_i32_0 : i32, i32
  }
  func.func @transform_14(%arg0: i32, %arg1: memref<2xi32, #tpu.memory_space<smem>>, %arg2: memref<24xi32, #tpu.memory_space<smem>>, %arg3: memref<17xi32, #tpu.memory_space<smem>>, %arg4: memref<24xi32, #tpu.memory_space<smem>>, %arg5: memref<24xi32, #tpu.memory_space<smem>>) -> (i32, i32) {
    %c0_i32 = arith.constant 0 : i32
    %c0_i32_0 = arith.constant 0 : i32
    %c0_i32_1 = arith.constant 0 : i32
    return %c0_i32, %c0_i32_0 : i32, i32
  }
  func.func @transform_15(%arg0: i32, %arg1: memref<2xi32, #tpu.memory_space<smem>>, %arg2: memref<24xi32, #tpu.memory_space<smem>>, %arg3: memref<17xi32, #tpu.memory_space<smem>>, %arg4: memref<24xi32, #tpu.memory_space<smem>>, %arg5: memref<24xi32, #tpu.memory_space<smem>>) -> (i32, i32) {
    %c0_i32 = arith.constant 0 : i32
    %c0_i32_0 = arith.constant 0 : i32
    %c0_i32_1 = arith.constant 0 : i32
    return %c0_i32, %c0_i32_0 : i32, i32
  }
}

module attributes {stable_mosaic.version = 11 : i64} {
  func.func @_gin_last_kernel(%arg0: i32, %arg1: memref<2xi32, #tpu.memory_space<smem>>, %arg2: memref<24xi32, #tpu.memory_space<smem>>, %arg3: memref<17xi32, #tpu.memory_space<smem>>, %arg4: memref<24xi32, #tpu.memory_space<smem>>, %arg5: memref<24xi32, #tpu.memory_space<smem>>, %arg6: memref<16x128xbf16, #tpu.memory_space<vmem>>, %arg7: memref<8x128xf32, #tpu.memory_space<vmem>>, %arg8: memref<16x8xf32, #tpu.memory_space<vmem>>, %arg9: memref<8x16xf32, #tpu.memory_space<vmem>>, %arg10: memref<8x128xf32, #tpu.memory_space<vmem>>, %arg11: memref<8x128xf32, #tpu.memory_space<vmem>>, %arg12: memref<8x128xf32, #tpu.memory_space<vmem>>, %arg13: memref<128x128xbf16, #tpu.memory_space<vmem>>, %arg14: memref<1x128xf32, #tpu.memory_space<vmem>>, %arg15: memref<128x128xbf16, #tpu.memory_space<vmem>>, %arg16: memref<1x128xf32, #tpu.memory_space<vmem>>, %arg17: memref<128x128xbf16, #tpu.memory_space<vmem>>, %arg18: memref<1x128xf32, #tpu.memory_space<vmem>>, %arg19: memref<8x128xf32, #tpu.memory_space<vmem>>, %arg20: memref<16x128xf32, #tpu.memory_space<vmem>>, %arg21: memref<16x128xf32, #tpu.memory_space<vmem>>) attributes {dimension_semantics = [#tpu.dimension_semantics<arbitrary>], iteration_bounds = array<i64: 1>, scalar_prefetch = 5 : i64, scratch_operands = 2 : i64, tpu.core_type = #tpu.core_type<tc>, window_params = [{pipeline_mode = #tpu.pipeline_mode<synchronous>, transform_indices = @transform_0, window_bounds = array<i64: 16, 128>}, {pipeline_mode = #tpu.pipeline_mode<synchronous>, transform_indices = @transform_1, window_bounds = array<i64: 8, 128>}, {pipeline_mode = #tpu.pipeline_mode<synchronous>, transform_indices = @transform_2, window_bounds = array<i64: 16, 8>}, {pipeline_mode = #tpu.pipeline_mode<synchronous>, transform_indices = @transform_3, window_bounds = array<i64: 8, 16>}, {pipeline_mode = #tpu.pipeline_mode<synchronous>, transform_indices = @transform_4, window_bounds = array<i64: 8, 128>}, {pipeline_mode = #tpu.pipeline_mode<synchronous>, transform_indices = @transform_5, window_bounds = array<i64: 8, 128>}, {pipeline_mode = #tpu.pipeline_mode<synchronous>, transform_indices = @transform_6, window_bounds = array<i64: 8, 128>}, {pipeline_mode = #tpu.pipeline_mode<synchronous>, transform_indices = @transform_7, window_bounds = array<i64: 128, 128>}, {pipeline_mode = #tpu.pipeline_mode<synchronous>, transform_indices = @transform_8, window_bounds = array<i64: 1, 128>}, {pipeline_mode = #tpu.pipeline_mode<synchronous>, transform_indices = @transform_9, window_bounds = array<i64: 128, 128>}, {pipeline_mode = #tpu.pipeline_mode<synchronous>, transform_indices = @transform_10, window_bounds = array<i64: 1, 128>}, {pipeline_mode = #tpu.pipeline_mode<synchronous>, transform_indices = @transform_11, window_bounds = array<i64: 128, 128>}, {pipeline_mode = #tpu.pipeline_mode<synchronous>, transform_indices = @transform_12, window_bounds = array<i64: 1, 128>}, {pipeline_mode = #tpu.pipeline_mode<synchronous>, transform_indices = @transform_13, window_bounds = array<i64: 8, 128>}]} {
    %c0 = arith.constant 0 : index
    %0 = memref.load %arg1[%c0] : memref<2xi32, #tpu.memory_space<smem>>
    %c0_0 = arith.constant 0 : index
    %c0_1 = arith.constant 0 : index
    %1 = vector.load %arg6[%c0_0, %c0_1] : memref<16x128xbf16, #tpu.memory_space<vmem>>, vector<16x128xbf16>
    %2 = arith.extf %1 : vector<16x128xbf16> to vector<16x128xf32>
    %c0_2 = arith.constant 0 : index
    %c0_3 = arith.constant 0 : index
    %3 = vector.load %arg8[%c0_2, %c0_3] : memref<16x8xf32, #tpu.memory_space<vmem>>, vector<16x8xf32>
    %c0_4 = arith.constant 0 : index
    %c0_5 = arith.constant 0 : index
    %4 = vector.load %arg7[%c0_4, %c0_5] : memref<8x128xf32, #tpu.memory_space<vmem>>, vector<8x128xf32>
    %cst = arith.constant dense<0.000000e+00> : vector<16x128xf32>
    %5 = tpu.matmul %3, %4, %cst {dimension_numbers = #tpu.dot_dimension_numbers<[1], [0], [0], [1], [0, 0, 1, 1], [], []>} : vector<16x8xf32>, vector<8x128xf32>, vector<16x128xf32> -> vector<16x128xf32>
    %6 = arith.addf %2, %5 : vector<16x128xf32>
    %c0_6 = arith.constant 0 : index
    %c0_7 = arith.constant 0 : index
    %7 = vector.load %arg20[%c0_6, %c0_7] : memref<16x128xf32, #tpu.memory_space<vmem>>, vector<16x128xf32>
    tpu.vector_store %arg20[%c0_6, %c0_7], %6 {strides = array<i32>} : memref<16x128xf32, #tpu.memory_space<vmem>>, vector<16x128xf32>,
    %cst_8 = arith.constant 0.000000e+00 : f32
    %8 = vector.broadcast %cst_8 : f32 to vector<16x128xf32>
    %c0_9 = arith.constant 0 : index
    %c0_10 = arith.constant 0 : index
    %9 = vector.load %arg21[%c0_9, %c0_10] : memref<16x128xf32, #tpu.memory_space<vmem>>, vector<16x128xf32>
    tpu.vector_store %arg21[%c0_9, %c0_10], %8 {strides = array<i32>} : memref<16x128xf32, #tpu.memory_space<vmem>>, vector<16x128xf32>,
    %c0_i32 = arith.constant 0 : i32
    %c0_i32_11 = arith.constant 0 : i32
    %10 = arith.subi %0, %c0_i32_11 : i32
    %11 = arith.addi %c0_i32_11, %10 : i32
    %c1_i32 = arith.constant 1 : i32
    scf.for %arg22 = %c0_i32_11 to %11 step %c1_i32  : i32 {
      %40 = arith.index_cast %arg22 : i32 to index
      %41 = memref.load %arg3[%40] : memref<17xi32, #tpu.memory_space<smem>>
      %c1_i32_39 = arith.constant 1 : i32
      %42 = arith.addi %arg22, %c1_i32_39 : i32
      %43 = arith.index_cast %42 : i32 to index
      %44 = memref.load %arg3[%43] : memref<17xi32, #tpu.memory_space<smem>>
      %cst_40 = arith.constant 0.000000e+00 : f32
      %45 = vector.broadcast %cst_40 : f32 to vector<1x128xf32>
      %46 = arith.subi %44, %41 : i32
      %47 = arith.addi %41, %46 : i32
      %c1_i32_41 = arith.constant 1 : i32
      %48 = scf.for %arg23 = %41 to %47 step %c1_i32_41 iter_args(%arg24 = %45) -> (vector<1x128xf32>)  : i32 {
        %51 = arith.index_cast %arg23 : i32 to index
        %52 = memref.load %arg2[%51] : memref<24xi32, #tpu.memory_space<smem>>
        %53 = arith.index_cast %52 : i32 to index
        %c0_43 = arith.constant 0 : index
        %54 = vector.load %arg20[%53, %c0_43] : memref<16x128xf32, #tpu.memory_space<vmem>>, vector<1x128xf32>
        %55 = arith.index_cast %arg23 : i32 to index
        %56 = memref.load %arg4[%55] : memref<24xi32, #tpu.memory_space<smem>>
        %57 = arith.index_cast %56 : i32 to index
        %c0_44 = arith.constant 0 : index
        %58 = vector.load %arg11[%57, %c0_44] : memref<8x128xf32, #tpu.memory_space<vmem>>, vector<1x128xf32>
        %59 = arith.addf %54, %58 : vector<1x128xf32>
        %60 = arith.index_cast %arg23 : i32 to index
        %61 = memref.load %arg5[%60] : memref<24xi32, #tpu.memory_space<smem>>
        %62 = arith.index_cast %61 : i32 to index
        %c0_45 = arith.constant 0 : index
        %63 = vector.load %arg12[%62, %c0_45] : memref<8x128xf32, #tpu.memory_space<vmem>>, vector<1x128xf32>
        %64 = arith.addf %59, %63 : vector<1x128xf32>
        %cst_46 = arith.constant 0.000000e+00 : f32
        %65 = vector.broadcast %cst_46 : f32 to vector<1x128xf32>
        %66 = arith.maximumf %64, %65 : vector<1x128xf32>
        %67 = arith.addf %arg24, %66 : vector<1x128xf32>
        scf.yield %67 : vector<1x128xf32>
      }
      %49 = arith.index_cast %arg22 : i32 to index
      %c0_42 = arith.constant 0 : index
      %50 = vector.load %arg21[%49, %c0_42] : memref<16x128xf32, #tpu.memory_space<vmem>>, vector<1x128xf32>
      tpu.vector_store %arg21[%49, %c0_42], %48 {strides = array<i32>} : memref<16x128xf32, #tpu.memory_space<vmem>>, vector<1x128xf32>,
    }
    %c0_12 = arith.constant 0 : index
    %c0_13 = arith.constant 0 : index
    %12 = vector.load %arg20[%c0_12, %c0_13] : memref<16x128xf32, #tpu.memory_space<vmem>>, vector<16x128xf32>
    %c0_14 = arith.constant 0 : index
    %c0_15 = arith.constant 0 : index
    %13 = vector.load %arg21[%c0_14, %c0_15] : memref<16x128xf32, #tpu.memory_space<vmem>>, vector<16x128xf32>
    %14 = arith.addf %12, %13 : vector<16x128xf32>
    %15 = arith.truncf %14 : vector<16x128xf32> to vector<16x128xbf16>
    %c0_16 = arith.constant 0 : index
    %c0_17 = arith.constant 0 : index
    %16 = vector.load %arg13[%c0_16, %c0_17] : memref<128x128xbf16, #tpu.memory_space<vmem>>, vector<128x128xbf16>
    %cst_18 = arith.constant dense<0.000000e+00> : vector<16x128xf32>
    %17 = tpu.matmul %15, %16, %cst_18 {dimension_numbers = #tpu.dot_dimension_numbers<[1], [0], [0], [1], [0, 0, 1, 1], [], []>} : vector<16x128xbf16>, vector<128x128xbf16>, vector<16x128xf32> -> vector<16x128xf32>
    %c0_19 = arith.constant 0 : index
    %c0_20 = arith.constant 0 : index
    %18 = vector.load %arg14[%c0_19, %c0_20] : memref<1x128xf32, #tpu.memory_space<vmem>>, vector<1x128xf32>
    %19 = vector.broadcast %18 : vector<1x128xf32> to vector<16x128xf32>
    %20 = arith.addf %17, %19 : vector<16x128xf32>
    %cst_21 = arith.constant 0.000000e+00 : f32
    %21 = vector.broadcast %cst_21 : f32 to vector<16x128xf32>
    %22 = arith.maximumf %20, %21 : vector<16x128xf32>
    %23 = arith.truncf %22 : vector<16x128xf32> to vector<16x128xbf16>
    %c0_22 = arith.constant 0 : index
    %c0_23 = arith.constant 0 : index
    %24 = vector.load %arg15[%c0_22, %c0_23] : memref<128x128xbf16, #tpu.memory_space<vmem>>, vector<128x128xbf16>
    %cst_24 = arith.constant dense<0.000000e+00> : vector<16x128xf32>
    %25 = tpu.matmul %23, %24, %cst_24 {dimension_numbers = #tpu.dot_dimension_numbers<[1], [0], [0], [1], [0, 0, 1, 1], [], []>} : vector<16x128xbf16>, vector<128x128xbf16>, vector<16x128xf32> -> vector<16x128xf32>
    %c0_25 = arith.constant 0 : index
    %c0_26 = arith.constant 0 : index
    %26 = vector.load %arg16[%c0_25, %c0_26] : memref<1x128xf32, #tpu.memory_space<vmem>>, vector<1x128xf32>
    %27 = vector.broadcast %26 : vector<1x128xf32> to vector<16x128xf32>
    %28 = arith.addf %25, %27 : vector<16x128xf32>
    %c0_27 = arith.constant 0 : index
    %c0_28 = arith.constant 0 : index
    %29 = vector.load %arg9[%c0_27, %c0_28] : memref<8x16xf32, #tpu.memory_space<vmem>>, vector<8x16xf32>
    %cst_29 = arith.constant dense<0.000000e+00> : vector<8x128xf32>
    %30 = tpu.matmul %29, %28, %cst_29 {dimension_numbers = #tpu.dot_dimension_numbers<[1], [0], [0], [1], [0, 0, 1, 1], [], []>} : vector<8x16xf32>, vector<16x128xf32>, vector<8x128xf32> -> vector<8x128xf32>
    %c0_30 = arith.constant 0 : index
    %c0_31 = arith.constant 0 : index
    %31 = vector.load %arg10[%c0_30, %c0_31] : memref<8x128xf32, #tpu.memory_space<vmem>>, vector<8x128xf32>
    %32 = arith.mulf %30, %31 : vector<8x128xf32>
    %33 = arith.truncf %32 : vector<8x128xf32> to vector<8x128xbf16>
    %c0_32 = arith.constant 0 : index
    %c0_33 = arith.constant 0 : index
    %34 = vector.load %arg17[%c0_32, %c0_33] : memref<128x128xbf16, #tpu.memory_space<vmem>>, vector<128x128xbf16>
    %cst_34 = arith.constant dense<0.000000e+00> : vector<8x128xf32>
    %35 = tpu.matmul %33, %34, %cst_34 {dimension_numbers = #tpu.dot_dimension_numbers<[1], [0], [0], [1], [0, 0, 1, 1], [], []>} : vector<8x128xbf16>, vector<128x128xbf16>, vector<8x128xf32> -> vector<8x128xf32>
    %c0_35 = arith.constant 0 : index
    %c0_36 = arith.constant 0 : index
    %36 = vector.load %arg18[%c0_35, %c0_36] : memref<1x128xf32, #tpu.memory_space<vmem>>, vector<1x128xf32>
    %37 = vector.broadcast %36 : vector<1x128xf32> to vector<8x128xf32>
    %38 = arith.addf %35, %37 : vector<8x128xf32>
    %c0_37 = arith.constant 0 : index
    %c0_38 = arith.constant 0 : index
    %39 = vector.load %arg19[%c0_37, %c0_38] : memref<8x128xf32, #tpu.memory_space<vmem>>, vector<8x128xf32>
    tpu.vector_store %arg19[%c0_37, %c0_38], %38 {strides = array<i32>} : memref<8x128xf32, #tpu.memory_space<vmem>>, vector<8x128xf32>,
    return
  }
  func.func @transform_0(%arg0: i32, %arg1: memref<2xi32, #tpu.memory_space<smem>>, %arg2: memref<24xi32, #tpu.memory_space<smem>>, %arg3: memref<17xi32, #tpu.memory_space<smem>>, %arg4: memref<24xi32, #tpu.memory_space<smem>>, %arg5: memref<24xi32, #tpu.memory_space<smem>>) -> (i32, i32) {
    %c0_i32 = arith.constant 0 : i32
    %c0_i32_0 = arith.constant 0 : i32
    %c0_i32_1 = arith.constant 0 : i32
    return %c0_i32, %c0_i32_0 : i32, i32
  }
  func.func @transform_1(%arg0: i32, %arg1: memref<2xi32, #tpu.memory_space<smem>>, %arg2: memref<24xi32, #tpu.memory_space<smem>>, %arg3: memref<17xi32, #tpu.memory_space<smem>>, %arg4: memref<24xi32, #tpu.memory_space<smem>>, %arg5: memref<24xi32, #tpu.memory_space<smem>>) -> (i32, i32) {
    %c0_i32 = arith.constant 0 : i32
    %c0_i32_0 = arith.constant 0 : i32
    %c0_i32_1 = arith.constant 0 : i32
    return %c0_i32, %c0_i32_0 : i32, i32
  }
  func.func @transform_2(%arg0: i32, %arg1: memref<2xi32, #tpu.memory_space<smem>>, %arg2: memref<24xi32, #tpu.memory_space<smem>>, %arg3: memref<17xi32, #tpu.memory_space<smem>>, %arg4: memref<24xi32, #tpu.memory_space<smem>>, %arg5: memref<24xi32, #tpu.memory_space<smem>>) -> (i32, i32) {
    %c0_i32 = arith.constant 0 : i32
    %c0_i32_0 = arith.constant 0 : i32
    %c0_i32_1 = arith.constant 0 : i32
    return %c0_i32, %c0_i32_0 : i32, i32
  }
  func.func @transform_3(%arg0: i32, %arg1: memref<2xi32, #tpu.memory_space<smem>>, %arg2: memref<24xi32, #tpu.memory_space<smem>>, %arg3: memref<17xi32, #tpu.memory_space<smem>>, %arg4: memref<24xi32, #tpu.memory_space<smem>>, %arg5: memref<24xi32, #tpu.memory_space<smem>>) -> (i32, i32) {
    %c0_i32 = arith.constant 0 : i32
    %c0_i32_0 = arith.constant 0 : i32
    %c0_i32_1 = arith.constant 0 : i32
    return %c0_i32, %c0_i32_0 : i32, i32
  }
  func.func @transform_4(%arg0: i32, %arg1: memref<2xi32, #tpu.memory_space<smem>>, %arg2: memref<24xi32, #tpu.memory_space<smem>>, %arg3: memref<17xi32, #tpu.memory_space<smem>>, %arg4: memref<24xi32, #tpu.memory_space<smem>>, %arg5: memref<24xi32, #tpu.memory_space<smem>>) -> (i32, i32) {
    %c0_i32 = arith.constant 0 : i32
    %c0_i32_0 = arith.constant 0 : i32
    %c0_i32_1 = arith.constant 0 : i32
    return %c0_i32, %c0_i32_0 : i32, i32
  }
  func.func @transform_5(%arg0: i32, %arg1: memref<2xi32, #tpu.memory_space<smem>>, %arg2: memref<24xi32, #tpu.memory_space<smem>>, %arg3: memref<17xi32, #tpu.memory_space<smem>>, %arg4: memref<24xi32, #tpu.memory_space<smem>>, %arg5: memref<24xi32, #tpu.memory_space<smem>>) -> (i32, i32) {
    %c0_i32 = arith.constant 0 : i32
    %c0_i32_0 = arith.constant 0 : i32
    %c0_i32_1 = arith.constant 0 : i32
    return %c0_i32, %c0_i32_0 : i32, i32
  }
  func.func @transform_6(%arg0: i32, %arg1: memref<2xi32, #tpu.memory_space<smem>>, %arg2: memref<24xi32, #tpu.memory_space<smem>>, %arg3: memref<17xi32, #tpu.memory_space<smem>>, %arg4: memref<24xi32, #tpu.memory_space<smem>>, %arg5: memref<24xi32, #tpu.memory_space<smem>>) -> (i32, i32) {
    %c0_i32 = arith.constant 0 : i32
    %c0_i32_0 = arith.constant 0 : i32
    %c0_i32_1 = arith.constant 0 : i32
    return %c0_i32, %c0_i32_0 : i32, i32
  }
  func.func @transform_7(%arg0: i32, %arg1: memref<2xi32, #tpu.memory_space<smem>>, %arg2: memref<24xi32, #tpu.memory_space<smem>>, %arg3: memref<17xi32, #tpu.memory_space<smem>>, %arg4: memref<24xi32, #tpu.memory_space<smem>>, %arg5: memref<24xi32, #tpu.memory_space<smem>>) -> (i32, i32) {
    %c0_i32 = arith.constant 0 : i32
    %c0_i32_0 = arith.constant 0 : i32
    %c0_i32_1 = arith.constant 0 : i32
    return %c0_i32, %c0_i32_0 : i32, i32
  }
  func.func @transform_8(%arg0: i32, %arg1: memref<2xi32, #tpu.memory_space<smem>>, %arg2: memref<24xi32, #tpu.memory_space<smem>>, %arg3: memref<17xi32, #tpu.memory_space<smem>>, %arg4: memref<24xi32, #tpu.memory_space<smem>>, %arg5: memref<24xi32, #tpu.memory_space<smem>>) -> (i32, i32) {
    %c0_i32 = arith.constant 0 : i32
    %c0_i32_0 = arith.constant 0 : i32
    %c0_i32_1 = arith.constant 0 : i32
    return %c0_i32, %c0_i32_0 : i32, i32
  }
  func.func @transform_9(%arg0: i32, %arg1: memref<2xi32, #tpu.memory_space<smem>>, %arg2: memref<24xi32, #tpu.memory_space<smem>>, %arg3: memref<17xi32, #tpu.memory_space<smem>>, %arg4: memref<24xi32, #tpu.memory_space<smem>>, %arg5: memref<24xi32, #tpu.memory_space<smem>>) -> (i32, i32) {
    %c0_i32 = arith.constant 0 : i32
    %c0_i32_0 = arith.constant 0 : i32
    %c0_i32_1 = arith.constant 0 : i32
    return %c0_i32, %c0_i32_0 : i32, i32
  }
  func.func @transform_10(%arg0: i32, %arg1: memref<2xi32, #tpu.memory_space<smem>>, %arg2: memref<24xi32, #tpu.memory_space<smem>>, %arg3: memref<17xi32, #tpu.memory_space<smem>>, %arg4: memref<24xi32, #tpu.memory_space<smem>>, %arg5: memref<24xi32, #tpu.memory_space<smem>>) -> (i32, i32) {
    %c0_i32 = arith.constant 0 : i32
    %c0_i32_0 = arith.constant 0 : i32
    %c0_i32_1 = arith.constant 0 : i32
    return %c0_i32, %c0_i32_0 : i32, i32
  }
  func.func @transform_11(%arg0: i32, %arg1: memref<2xi32, #tpu.memory_space<smem>>, %arg2: memref<24xi32, #tpu.memory_space<smem>>, %arg3: memref<17xi32, #tpu.memory_space<smem>>, %arg4: memref<24xi32, #tpu.memory_space<smem>>, %arg5: memref<24xi32, #tpu.memory_space<smem>>) -> (i32, i32) {
    %c0_i32 = arith.constant 0 : i32
    %c0_i32_0 = arith.constant 0 : i32
    %c0_i32_1 = arith.constant 0 : i32
    return %c0_i32, %c0_i32_0 : i32, i32
  }
  func.func @transform_12(%arg0: i32, %arg1: memref<2xi32, #tpu.memory_space<smem>>, %arg2: memref<24xi32, #tpu.memory_space<smem>>, %arg3: memref<17xi32, #tpu.memory_space<smem>>, %arg4: memref<24xi32, #tpu.memory_space<smem>>, %arg5: memref<24xi32, #tpu.memory_space<smem>>) -> (i32, i32) {
    %c0_i32 = arith.constant 0 : i32
    %c0_i32_0 = arith.constant 0 : i32
    %c0_i32_1 = arith.constant 0 : i32
    return %c0_i32, %c0_i32_0 : i32, i32
  }
  func.func @transform_13(%arg0: i32, %arg1: memref<2xi32, #tpu.memory_space<smem>>, %arg2: memref<24xi32, #tpu.memory_space<smem>>, %arg3: memref<17xi32, #tpu.memory_space<smem>>, %arg4: memref<24xi32, #tpu.memory_space<smem>>, %arg5: memref<24xi32, #tpu.memory_space<smem>>) -> (i32, i32) {
    %c0_i32 = arith.constant 0 : i32
    %c0_i32_0 = arith.constant 0 : i32
    %c0_i32_1 = arith.constant 0 : i32
    return %c0_i32, %c0_i32_0 : i32, i32
  }
}

</mosaic_0001>

<llo_original>
// kernel: custom-call.4
$region0: #{custom-call.4}
  %s0 = inlined_call_operand.vmem [shape: u32[17], index: 0, kind: output, shape index: {}]

// kernel: mul.5
$region0: #{mul.5}
  #allocation0 [shape = 's32[1]{0}', space=sflag, size = 0x4, scoped, tag = 'scoped memory for mul.5']
  %s0 = inlined_call_operand.vmem [shape: f32[8], index: 0, kind: input, shape index: {}]
  %s1 = inlined_call_operand.vmem [shape: f32[8,128], index: 1, kind: output, shape index: {}]
  // Predicated region
  $region2: #{mul.5} parent=0 // pred_check
    _
  $region3: #{mul.5} parent=0 // pred_check_branch
    %3 = sbr.rel (0) target = $region5
  $region4: #{mul.5} parent=0 // pred_region
    _
  $region5: #{mul.5} parent=0 // pred_fallthru
    _
  %v4 = vld [vmem:[%s0] ss:$0 sm:$0xff]
  %6 = vbcast.lane.b32.xlu0 %v4, 256
  %v7 = vpop.permute.xlu0 %6
  %8 = vst [vmem:[%s1] sm:$0xff] %v7

// kernel: gnn_forward.5
$region0: #{gnn_forward.5}
  #allocation0 [shape = 'u32[]', space=smem, size = 0x4, offset = 0x4, fixed_abs, tag = 'smem constant byte address 0x4 - core index']
  #allocation1 [shape = 'u32[144,128]{1,0:T(1,128)}', space=vmem, size = 0x12000, scoped, tag = 'internal scratch']
  #allocation2 [shape = 'f32[16,128]{1,0:T(8,128)}', space=vmem, size = 0x2000, scoped, tag = 'scratch operand']
  #allocation3 [shape = 'f32[16,128]{1,0:T(8,128)}', space=vmem, size = 0x2000, scoped, tag = 'scratch operand']
  #allocation4 [shape = 's32[1]{0}', space=sflag, size = 0x4, scoped, tag = 'scoped memory for gnn_forward.5']
  #allocation5 [shape = 'u8[512]{0}', space=smem, size = 0x200, scoped, tag = 'prefetched SMEM operand 0']
  #allocation6 [shape = 'u8[512]{0}', space=smem, size = 0x200, scoped, tag = 'prefetched SMEM operand 1']
  #allocation7 [shape = 'u8[512]{0}', space=smem, size = 0x200, scoped, tag = 'prefetched SMEM operand 2']
  #allocation8 [shape = 'u8[512]{0}', space=smem, size = 0x200, scoped, tag = 'prefetched SMEM operand 3']
  #allocation9 [shape = 'u8[512]{0}', space=smem, size = 0x200, scoped, tag = 'prefetched SMEM operand 4']
  %s0 = inlined_call_operand.vmem [shape: s32[2], index: 0, kind: input, shape index: {}]
  %s1 = inlined_call_operand.vmem [shape: s32[24], index: 1, kind: input, shape index: {}]
  %s2 = inlined_call_operand.vmem [shape: s32[17], index: 2, kind: input, shape index: {}]
  %s3 = inlined_call_operand.vmem [shape: s32[24], index: 3, kind: input, shape index: {}]
  %s4 = inlined_call_operand.vmem [shape: s32[24], index: 4, kind: input, shape index: {}]
  %s5 = inlined_call_operand.vmem [shape: bf16[16,128], index: 5, kind: input, shape index: {}]
  %s6 = inlined_call_operand.vmem [shape: f32[8,128], index: 6, kind: input, shape index: {}]
  %s7 = inlined_call_operand.vmem [shape: f32[16,8], index: 7, kind: input, shape index: {}]
  %s8 = inlined_call_operand.vmem [shape: f32[8,16], index: 8, kind: input, shape index: {}]
  %s9 = inlined_call_operand.vmem [shape: f32[8,128], index: 9, kind: input, shape index: {}]
  %s10 = inlined_call_operand.vmem [shape: f32[8,128], index: 10, kind: input, shape index: {}]
  %s11 = inlined_call_operand.vmem [shape: f32[8,128], index: 11, kind: input, shape index: {}]
  %s12 = inlined_call_operand.vmem [shape: bf16[128,128], index: 12, kind: input, shape index: {}]
  %s13 = inlined_call_operand.vmem [shape: f32[1,128], index: 13, kind: input, shape index: {}]
  %s14 = inlined_call_operand.vmem [shape: bf16[128,128], index: 14, kind: input, shape index: {}]
  %s15 = inlined_call_operand.vmem [shape: f32[1,128], index: 15, kind: input, shape index: {}]
  %s16 = inlined_call_operand.vmem [shape: bf16[128,128], index: 16, kind: input, shape index: {}]
  %s17 = inlined_call_operand.vmem [shape: f32[1,128], index: 17, kind: input, shape index: {}]
  %s18 = inlined_call_operand.vmem [shape: f32[8,128], index: 18, kind: output, shape index: {}]
  %s19 = sld [smem:[#allocation0]]
  $region76: #{gnn_forward.5} parent=0
    _
  %s21 = ssub.s32 1, %s19
  %s22 = scalar_select 0, %s21, %s19
  %s23 = sshll.u32 %s0, 4
  %s24 = int_to_ptr.vmem [resolvable:$true] %s23
  %26 = dma.vmem_to_smem %s24, 16, [#allocation5], [#allocation4]
  %s27 = sshll.u32 %s1, 4
  %s28 = int_to_ptr.vmem [resolvable:$true] %s27
  %30 = dma.vmem_to_smem %s28, 16, [#allocation6], [#allocation4]
  %s31 = sshll.u32 %s2, 4
  %s32 = int_to_ptr.vmem [resolvable:$true] %s31
  %34 = dma.vmem_to_smem %s32, 16, [#allocation7], [#allocation4]
  %s35 = sshll.u32 %s3, 4
  %s36 = int_to_ptr.vmem [resolvable:$true] %s35
  %38 = dma.vmem_to_smem %s36, 16, [#allocation8], [#allocation4]
  %s39 = sshll.u32 %s4, 4
  %s40 = int_to_ptr.vmem [resolvable:$true] %s39
  %42 = dma.vmem_to_smem %s40, 16, [#allocation9], [#allocation4]
  %43 = dma.done [#allocation4], 80
  %44 = sfence
  // Predicated region
  $region2: #{gnn_forward.5} parent=0 // pred_check
    _
  $region3: #{gnn_forward.5} parent=0 // pred_check_branch
    %46 = sbr.rel (0) target = $region5
  $region4: #{gnn_forward.5} parent=0 // pred_region
    _
  $region5: #{gnn_forward.5} parent=0 // pred_fallthru
    _
  // Predicated region
  $region6: #{gnn_forward.5} parent=0 // pred_check
    _
  $region7: #{gnn_forward.5} parent=0 // pred_check_branch
    %48 = sbr.rel (0) target = $region9
  $region8: #{gnn_forward.5} parent=0 // pred_region
    _
  $region9: #{gnn_forward.5} parent=0 // pred_fallthru
    _
  // Predicated region
  $region10: #{gnn_forward.5} parent=0 // pred_check
    _
  $region11: #{gnn_forward.5} parent=0 // pred_check_branch
    %50 = sbr.rel (0) target = $region13
  $region12: #{gnn_forward.5} parent=0 // pred_region
    _
  $region13: #{gnn_forward.5} parent=0 // pred_fallthru
    _
  // Predicated region
  $region14: #{gnn_forward.5} parent=0 // pred_check
    _
  $region15: #{gnn_forward.5} parent=0 // pred_check_branch
    %52 = sbr.rel (0) target = $region17
  $region16: #{gnn_forward.5} parent=0 // pred_region
    _
  $region17: #{gnn_forward.5} parent=0 // pred_fallthru
    _
  // Predicated region
  $region18: #{gnn_forward.5} parent=0 // pred_check
    _
  $region19: #{gnn_forward.5} parent=0 // pred_check_branch
    %54 = sbr.rel (0) target = $region21
  $region20: #{gnn_forward.5} parent=0 // pred_region
    _
  $region21: #{gnn_forward.5} parent=0 // pred_fallthru
    _
  // Predicated region
  $region22: #{gnn_forward.5} parent=0 // pred_check
    _
  $region23: #{gnn_forward.5} parent=0 // pred_check_branch
    %56 = sbr.rel (0) target = $region25
  $region24: #{gnn_forward.5} parent=0 // pred_region
    _
  $region25: #{gnn_forward.5} parent=0 // pred_fallthru
    _
  // Predicated region
  $region26: #{gnn_forward.5} parent=0 // pred_check
    _
  $region27: #{gnn_forward.5} parent=0 // pred_check_branch
    %58 = sbr.rel (0) target = $region29
  $region28: #{gnn_forward.5} parent=0 // pred_region
    _
  $region29: #{gnn_forward.5} parent=0 // pred_fallthru
    _
  // Predicated region
  $region30: #{gnn_forward.5} parent=0 // pred_check
    _
  $region31: #{gnn_forward.5} parent=0 // pred_check_branch
    %60 = sbr.rel (0) target = $region33
  $region32: #{gnn_forward.5} parent=0 // pred_region
    _
  $region33: #{gnn_forward.5} parent=0 // pred_fallthru
    _
  // Predicated region
  $region34: #{gnn_forward.5} parent=0 // pred_check
    _
  $region35: #{gnn_forward.5} parent=0 // pred_check_branch
    %62 = sbr.rel (0) target = $region37
  $region36: #{gnn_forward.5} parent=0 // pred_region
    _
  $region37: #{gnn_forward.5} parent=0 // pred_fallthru
    _
  // Predicated region
  $region38: #{gnn_forward.5} parent=0 // pred_check
    _
  $region39: #{gnn_forward.5} parent=0 // pred_check_branch
    %64 = sbr.rel (0) target = $region41
  $region40: #{gnn_forward.5} parent=0 // pred_region
    _
  $region41: #{gnn_forward.5} parent=0 // pred_fallthru
    _
  // Predicated region
  $region42: #{gnn_forward.5} parent=0 // pred_check
    _
  $region43: #{gnn_forward.5} parent=0 // pred_check_branch
    %66 = sbr.rel (0) target = $region45
  $region44: #{gnn_forward.5} parent=0 // pred_region
    _
  $region45: #{gnn_forward.5} parent=0 // pred_fallthru
    _
  // Predicated region
  $region46: #{gnn_forward.5} parent=0 // pred_check
    _
  $region47: #{gnn_forward.5} parent=0 // pred_check_branch
    %68 = sbr.rel (0) target = $region49
  $region48: #{gnn_forward.5} parent=0 // pred_region
    _
  $region49: #{gnn_forward.5} parent=0 // pred_fallthru
    _
  // Predicated region
  $region50: #{gnn_forward.5} parent=0 // pred_check
    _
  $region51: #{gnn_forward.5} parent=0 // pred_check_branch
    %70 = sbr.rel (0) target = $region53
  $region52: #{gnn_forward.5} parent=0 // pred_region
    _
  $region53: #{gnn_forward.5} parent=0 // pred_fallthru
    _
  %s72 = sld [smem:[#allocation5]]
  %v73 = vld [vmem:[%s5] sm:$0xf]
  %v74 = vld [vmem:[%s5 + $0x4] sm:$0xf]
  %v75 = vunpack.c.l.bf16 %v73
  %v76 = vunpack.c.l.bf16 %v74
  %v77 = vld [vmem:[%s7] sm:$0xff]
  %v78 = vld [vmem:[%s7 + $0x8] sm:$0xff]
  %v79 = vld [vmem:[%s6] sm:$0xff]
  %vm80 = vcmask 64512
  %v82 = vsel %vm80, %v77, 0
  %v85 = vsel %vm80, %v78, 0
  %87 = vmatprep.subr.mxu0 0.0
  %88 = vmatpush1.msra.mxu0 %v79
  %89 = vmatprep.subr.mxu0 0.0
  %90 = vmatpush1.msra.mxu0 0.0
  %91 = vmatprep.subr.mxu0 0.0
  %92 = vmatpush1.msra.mxu0 0.0
  %93 = vmatprep.subr.mxu0 0.0
  %94 = vmatpush1.msra.mxu0 0.0
  %95 = vmatprep.subr.mxu0 0.0
  %96 = vmatpush1.msra.mxu0 0.0
  %97 = vmatprep.subr.mxu0 0.0
  %98 = vmatpush1.msra.mxu0 0.0
  %99 = vmatprep.subr.mxu0 0.0
  %100 = vmatpush1.msra.mxu0 0.0
  %101 = vmatprep.subr.mxu0 0.0
  %102 = vmatpush1.msra.mxu0 0.0
  %103 = vmatprep.subr.mxu0 0.0
  %104 = vmatpush1.msra.mxu0 0.0
  %105 = vmatprep.subr.mxu0 0.0
  %106 = vmatpush1.msra.mxu0 0.0
  %107 = vmatprep.subr.mxu0 0.0
  %108 = vmatpush1.msra.mxu0 0.0
  %109 = vmatprep.subr.mxu0 0.0
  %110 = vmatpush1.msra.mxu0 0.0
  %111 = vmatprep.subr.mxu0 0.0
  %112 = vmatpush1.msra.mxu0 0.0
  %113 = vmatprep.subr.mxu0 0.0
  %114 = vmatpush1.msra.mxu0 0.0
  %115 = vmatprep.subr.mxu0 0.0
  %116 = vmatpush1.msra.mxu0 0.0
  %117 = vmatprep.subr.mxu0 0.0
  %118 = vmatpush1.msra.mxu0 0.0
  %119 = vmatprep.subr.mxu0 0.0
  %120 = vmatpush1.msra.mxu0 0.0
  %121 = vmatprep.subr.mxu0 0.0
  %122 = vmatpush1.msra.mxu0 0.0
  %123 = vmatprep.subr.mxu0 0.0
  %124 = vmatpush1.msra.mxu0 0.0
  %125 = vmatprep.subr.mxu0 0.0
  %126 = vmatpush1.msra.mxu0 0.0
  %127 = vmatprep.subr.mxu0 0.0
  %128 = vmatpush1.msra.mxu0 0.0
  %129 = vmatprep.subr.mxu0 0.0
  %130 = vmatpush1.msra.mxu0 0.0
  %131 = vmatprep.subr.mxu0 0.0
  %132 = vmatpush1.msra.mxu0 0.0
  %133 = vmatprep.subr.mxu0 0.0
  %134 = vmatpush1.msra.mxu0 0.0
  %135 = vmatprep.subr.mxu0 0.0
  %136 = vmatpush1.msra.mxu0 0.0
  %137 = vmatprep.subr.mxu0 0.0
  %138 = vmatpush1.msra.mxu0 0.0
  %139 = vmatprep.subr.mxu0 0.0
  %140 = vmatpush1.msra.mxu0 0.0
  %141 = vmatprep.subr.mxu0 0.0
  %142 = vmatpush1.msra.mxu0 0.0
  %143 = vmatprep.subr.mxu0 0.0
  %144 = vmatpush1.msra.mxu0 0.0
  %145 = vmatprep.subr.mxu0 0.0
  %146 = vmatpush1.msra.mxu0 0.0
  %147 = vmatprep.subr.mxu0 0.0
  %148 = vmatpush1.msra.mxu0 0.0
  %149 = vmatprep.subr.mxu0 0.0
  %150 = vmatpush1.msra.mxu0 0.0
  %151 = vmatprep.mubr.f32.mxu0 0.0
  %152 = vmatmul.mubr.f32.gmra.mrb[0].mxu0 %v82
  %v153 = vpop.f32.mrb[0].mxu0
  %v154 = vadd.f32 0.0, %v153
  %v155 = vpop.f32.mrb[0].mxu0
  %156 = vmatprep.mubr.f32.mxu0 0.0
  %157 = vmatmul.mubr.f32.gmra.mrb[0].mxu0 %v85
  %v158 = vpop.f32.mrb[0].mxu0
  %v159 = vadd.f32 0.0, %v158
  %v160 = vpop.f32.mrb[0].mxu0
  %161 = vdwg.mxu0
  %v162 = vadd.f32 %v75, %v154
  %v163 = vadd.f32 %v76, %v159
  %164 = vst [vmem:[#allocation2] sm:$0xff] %v162
  %165 = vst [vmem:[#allocation2 + $0x8] sm:$0xff] %v163
  %166 = vst [vmem:[#allocation3] sm:$0xff] 0.0
  %167 = vst [vmem:[#allocation3 + $0x8] sm:$0xff] 0.0
  // While loop
  $region54: #{gnn_forward.5} parent=0 // loop_pre_header
    _
  $region55: #{gnn_forward.5} parent=0 // loop_header
    %s169 = sphi 0, %s171
    %p170 = scmp.ge.s32.totalorder %s169, %s72
  $region56: #{gnn_forward.5} parent=0 // loop_header_branch
    %173 = sbr.rel (%p170) target = $region60
  $region57: #{gnn_forward.5} parent=0 // loop_body
    %s174 = sld [smem:[#allocation7 + %s169]]
    %s175 = sadd.s32 %s169, 1
    %s176 = sld [smem:[#allocation7 + %s175]]
    // While loop
    $region61: #{gnn_forward.5} parent=57 // loop_pre_header
      _
    $region62: #{gnn_forward.5} parent=57 // loop_header
      %s178 = sphi %s174, %s180
      %p179 = scmp.ge.s32.totalorder %s178, %s176
      %v183 = vphi 0.0, %v196
    $region63: #{gnn_forward.5} parent=57 // loop_header_branch
      %182 = sbr.rel (%p179) target = $region67
    $region64: #{gnn_forward.5} parent=57 // loop_body
      %s184 = sld [smem:[#allocation6 + %s178]]
      %s185 = scalar_lea.vmem [#allocation2], %s184
      %v186 = vld [vmem:[%s185] sm:$0x1]
      %s187 = sld [smem:[#allocation8 + %s178]]
      %s188 = scalar_lea.vmem %s10, %s187
      %v189 = vld [vmem:[%s188] sm:$0x1]
      %v190 = vadd.f32 %v186, %v189
      %s191 = sld [smem:[#allocation9 + %s178]]
      %s192 = scalar_lea.vmem %s11, %s191
      %v193 = vld [vmem:[%s192] sm:$0x1]
      %v194 = vadd.f32 %v190, %v193
      %v195 = vmax.f32 %v194, 0.0
      %v196 = vadd.f32 %v183, %v195
    $region65: #{gnn_forward.5} parent=57 // loop_footer
      %s180 = sadd.s32 %s178, 1
    $region66: #{gnn_forward.5} parent=57 // loop_footer_branch
      %177 = sbr.rel target = $region62
    $region67: #{gnn_forward.5} parent=57 // loop_exit
      _
    %s197 = scalar_lea.vmem [#allocation3], %s169
    %198 = vst [vmem:[%s197] sm:$0x1] %v183
  $region58: #{gnn_forward.5} parent=0 // loop_footer
    %s171 = sadd.s32 %s169, 1
  $region59: #{gnn_forward.5} parent=0 // loop_footer_branch
    %168 = sbr.rel target = $region55
  $region60: #{gnn_forward.5} parent=0 // loop_exit
    _
  %v199 = vld [vmem:[#allocation2] sm:$0xff]
  %v200 = vld [vmem:[#allocation2 + $0x8] sm:$0xff]
  %v201 = vld [vmem:[#allocation3] sm:$0xff]
  %v202 = vld [vmem:[#allocation3 + $0x8] sm:$0xff]
  %v203 = vadd.f32 %v199, %v201
  %v204 = vadd.f32 %v200, %v202
  %v205 = vpack.c.bf16 %v204, %v203
  %v206 = vld [vmem:[%s12] sm:$0xf]
  %v207 = vld [vmem:[%s12 + $0x4] sm:$0xf]
  %v208 = vld [vmem:[%s12 + $0x8] sm:$0xf]
  %v209 = vld [vmem:[%s12 + $0xc] sm:$0xf]
  %v210 = vld [vmem:[%s12 + $0x10] sm:$0xf]
  %v211 = vld [vmem:[%s12 + $0x14] sm:$0xf]
  %v212 = vld [vmem:[%s12 + $0x18] sm:$0xf]
  %v213 = vld [vmem:[%s12 + $0x1c] sm:$0xf]
  %v214 = vld [vmem:[%s12 + $0x20] sm:$0xf]
  %v215 = vld [vmem:[%s12 + $0x24] sm:$0xf]
  %v216 = vld [vmem:[%s12 + $0x28] sm:$0xf]
  %v217 = vld [vmem:[%s12 + $0x2c] sm:$0xf]
  %v218 = vld [vmem:[%s12 + $0x30] sm:$0xf]
  %v219 = vld [vmem:[%s12 + $0x34] sm:$0xf]
  %v220 = vld [vmem:[%s12 + $0x38] sm:$0xf]
  %v221 = vld [vmem:[%s12 + $0x3c] sm:$0xf]
  %v222 = vld [vmem:[%s13] sm:$0x1]
  %v224 = vlaneseq
  %v225 = vshrl.u32 %v224, 7
  %v226 = vsub.s32 0, %v225
  %v227 = vrot.slane %v222, %v226
  %v245 = vunpack.c.l.b16 %v206
  %v246 = vunpack.c.l.b16 %v207
  %v247 = vunpack.c.l.b16 %v208
  %v248 = vunpack.c.l.b16 %v209
  %v249 = vunpack.c.l.b16 %v210
  %v250 = vunpack.c.l.b16 %v211
  %v251 = vunpack.c.l.b16 %v212
  %v252 = vunpack.c.l.b16 %v213
  %v253 = vunpack.c.l.b16 %v214
  %v254 = vunpack.c.l.b16 %v215
  %v255 = vunpack.c.l.b16 %v216
  %v256 = vunpack.c.l.b16 %v217
  %v257 = vunpack.c.l.b16 %v218
  %v258 = vunpack.c.l.b16 %v219
  %v259 = vunpack.c.l.b16 %v220
  %v260 = vunpack.c.l.b16 %v221
  %v261 = vpack.c.b16 %v246, %v245
  %v262 = vpack.c.b16 %v248, %v247
  %v263 = vpack.c.b16 %v250, %v249
  %v264 = vpack.c.b16 %v252, %v251
  %v265 = vpack.c.b16 %v254, %v253
  %v266 = vpack.c.b16 %v256, %v255
  %v267 = vpack.c.b16 %v258, %v257
  %v268 = vpack.c.b16 %v260, %v259
  %277 = vmatprep.subr.bf16.mxu0 0
  %278 = vmatpush1.bf16.msra.mxu0 %v261
  %279 = vmatprep.subr.bf16.mxu0 0
  %280 = vmatpush1.bf16.msra.mxu0 %v262
  %281 = vmatprep.subr.bf16.mxu0 0
  %282 = vmatpush1.bf16.msra.mxu0 %v263
  %283 = vmatprep.subr.bf16.mxu0 0
  %284 = vmatpush1.bf16.msra.mxu0 %v264
  %285 = vmatprep.subr.bf16.mxu0 0
  %286 = vmatpush1.bf16.msra.mxu0 %v265
  %287 = vmatprep.subr.bf16.mxu0 0
  %288 = vmatpush1.bf16.msra.mxu0 %v266
  %289 = vmatprep.subr.bf16.mxu0 0
  %290 = vmatpush1.bf16.msra.mxu0 %v267
  %291 = vmatprep.subr.bf16.mxu0 0
  %292 = vmatpush1.bf16.msra.mxu0 %v268
  %293 = vmatprep.subr.bf16.mxu0 0
  %294 = vmatpush1.bf16.msra.mxu0 0
  %295 = vmatprep.subr.bf16.mxu0 0
  %296 = vmatpush1.bf16.msra.mxu0 0
  %297 = vmatprep.subr.bf16.mxu0 0
  %298 = vmatpush1.bf16.msra.mxu0 0
  %299 = vmatprep.subr.bf16.mxu0 0
  %300 = vmatpush1.bf16.msra.mxu0 0
  %301 = vmatprep.subr.bf16.mxu0 0
  %302 = vmatpush1.bf16.msra.mxu0 0
  %303 = vmatprep.subr.bf16.mxu0 0
  %304 = vmatpush1.bf16.msra.mxu0 0
  %305 = vmatprep.subr.bf16.mxu0 0
  %306 = vmatpush1.bf16.msra.mxu0 0
  %307 = vmatprep.subr.bf16.mxu0 0
  %308 = vmatpush1.bf16.msra.mxu0 0
  %309 = vmatprep.mubr.bf16.mxu0 0
  %310 = vmatmul.mubr.bf16.gmra.mrb[0].mxu0 %v205
  %v311 = vpop.f32.mrb[0].mxu0
  %v312 = vadd.f32 %v227, %v311
  %v313 = vpop.f32.mrb[0].mxu0
  %v314 = vpop.f32.mrb[0].mxu0
  %v315 = vadd.f32 %v227, %v314
  %v316 = vpop.f32.mrb[0].mxu0
  %317 = vdwg.mxu0
  %v318 = vmax.f32 %v312, 0.0
  %v319 = vmax.f32 %v315, 0.0
  %v320 = vpack.c.bf16 %v319, %v318
  %v321 = vld [vmem:[%s14] sm:$0xf]
  %v322 = vld [vmem:[%s14 + $0x4] sm:$0xf]
  %v323 = vld [vmem:[%s14 + $0x8] sm:$0xf]
  %v324 = vld [vmem:[%s14 + $0xc] sm:$0xf]
  %v325 = vld [vmem:[%s14 + $0x10] sm:$0xf]
  %v326 = vld [vmem:[%s14 + $0x14] sm:$0xf]
  %v327 = vld [vmem:[%s14 + $0x18] sm:$0xf]
  %v328 = vld [vmem:[%s14 + $0x1c] sm:$0xf]
  %v329 = vld [vmem:[%s14 + $0x20] sm:$0xf]
  %v330 = vld [vmem:[%s14 + $0x24] sm:$0xf]
  %v331 = vld [vmem:[%s14 + $0x28] sm:$0xf]
  %v332 = vld [vmem:[%s14 + $0x2c] sm:$0xf]
  %v333 = vld [vmem:[%s14 + $0x30] sm:$0xf]
  %v334 = vld [vmem:[%s14 + $0x34] sm:$0xf]
  %v335 = vld [vmem:[%s14 + $0x38] sm:$0xf]
  %v336 = vld [vmem:[%s14 + $0x3c] sm:$0xf]
  %v337 = vld [vmem:[%s15] sm:$0x1]
  %v339 = vlaneseq
  %v340 = vshrl.u32 %v339, 7
  %v341 = vsub.s32 0, %v340
  %v342 = vrot.slane %v337, %v341
  %v360 = vunpack.c.l.b16 %v321
  %v361 = vunpack.c.l.b16 %v322
  %v362 = vunpack.c.l.b16 %v323
  %v363 = vunpack.c.l.b16 %v324
  %v364 = vunpack.c.l.b16 %v325
  %v365 = vunpack.c.l.b16 %v326
  %v366 = vunpack.c.l.b16 %v327
  %v367 = vunpack.c.l.b16 %v328
  %v368 = vunpack.c.l.b16 %v329
  %v369 = vunpack.c.l.b16 %v330
  %v370 = vunpack.c.l.b16 %v331
  %v371 = vunpack.c.l.b16 %v332
  %v372 = vunpack.c.l.b16 %v333
  %v373 = vunpack.c.l.b16 %v334
  %v374 = vunpack.c.l.b16 %v335
  %v375 = vunpack.c.l.b16 %v336
  %v376 = vpack.c.b16 %v361, %v360
  %v377 = vpack.c.b16 %v363, %v362
  %v378 = vpack.c.b16 %v365, %v364
  %v379 = vpack.c.b16 %v367, %v366
  %v380 = vpack.c.b16 %v369, %v368
  %v381 = vpack.c.b16 %v371, %v370
  %v382 = vpack.c.b16 %v373, %v372
  %v383 = vpack.c.b16 %v375, %v374
  %392 = vmatprep.subr.bf16.mxu0 0
  %393 = vmatpush1.bf16.msra.mxu0 %v376
  %394 = vmatprep.subr.bf16.mxu0 0
  %395 = vmatpush1.bf16.msra.mxu0 %v377
  %396 = vmatprep.subr.bf16.mxu0 0
  %397 = vmatpush1.bf16.msra.mxu0 %v378
  %398 = vmatprep.subr.bf16.mxu0 0
  %399 = vmatpush1.bf16.msra.mxu0 %v379
  %400 = vmatprep.subr.bf16.mxu0 0
  %401 = vmatpush1.bf16.msra.mxu0 %v380
  %402 = vmatprep.subr.bf16.mxu0 0
  %403 = vmatpush1.bf16.msra.mxu0 %v381
  %404 = vmatprep.subr.bf16.mxu0 0
  %405 = vmatpush1.bf16.msra.mxu0 %v382
  %406 = vmatprep.subr.bf16.mxu0 0
  %407 = vmatpush1.bf16.msra.mxu0 %v383
  %408 = vmatprep.subr.bf16.mxu0 0
  %409 = vmatpush1.bf16.msra.mxu0 0
  %410 = vmatprep.subr.bf16.mxu0 0
  %411 = vmatpush1.bf16.msra.mxu0 0
  %412 = vmatprep.subr.bf16.mxu0 0
  %413 = vmatpush1.bf16.msra.mxu0 0
  %414 = vmatprep.subr.bf16.mxu0 0
  %415 = vmatpush1.bf16.msra.mxu0 0
  %416 = vmatprep.subr.bf16.mxu0 0
  %417 = vmatpush1.bf16.msra.mxu0 0
  %418 = vmatprep.subr.bf16.mxu0 0
  %419 = vmatpush1.bf16.msra.mxu0 0
  %420 = vmatprep.subr.bf16.mxu0 0
  %421 = vmatpush1.bf16.msra.mxu0 0
  %422 = vmatprep.subr.bf16.mxu0 0
  %423 = vmatpush1.bf16.msra.mxu0 0
  %424 = vmatprep.mubr.bf16.mxu0 0
  %425 = vmatmul.mubr.bf16.gmra.mrb[0].mxu0 %v320
  %v426 = vpop.f32.mrb[0].mxu0
  %v427 = vadd.f32 %v342, %v426
  %v428 = vpop.f32.mrb[0].mxu0
  %v429 = vpop.f32.mrb[0].mxu0
  %v430 = vadd.f32 %v342, %v429
  %v431 = vpop.f32.mrb[0].mxu0
  %432 = vdwg.mxu0
  %v433 = vld [vmem:[%s8] sm:$0xff]
  %vm434 = vcmask 130048
  %v436 = vsel %vm434, %v433, 0
  %438 = vmatprep.subr.mxu0 0.0
  %439 = vmatpush1.msra.mxu0 %v427
  %440 = vmatprep.subr.mxu0 0.0
  %441 = vmatpush1.msra.mxu0 %v430
  %442 = vmatprep.subr.mxu0 0.0
  %443 = vmatpush1.msra.mxu0 0.0
  %444 = vmatprep.subr.mxu0 0.0
  %445 = vmatpush1.msra.mxu0 0.0
  %446 = vmatprep.subr.mxu0 0.0
  %447 = vmatpush1.msra.mxu0 0.0
  %448 = vmatprep.subr.mxu0 0.0
  %449 = vmatpush1.msra.mxu0 0.0
  %450 = vmatprep.subr.mxu0 0.0
  %451 = vmatpush1.msra.mxu0 0.0
  %452 = vmatprep.subr.mxu0 0.0
  %453 = vmatpush1.msra.mxu0 0.0
  %454 = vmatprep.subr.mxu0 0.0
  %455 = vmatpush1.msra.mxu0 0.0
  %456 = vmatprep.subr.mxu0 0.0
  %457 = vmatpush1.msra.mxu0 0.0
  %458 = vmatprep.subr.mxu0 0.0
  %459 = vmatpush1.msra.mxu0 0.0
  %460 = vmatprep.subr.mxu0 0.0
  %461 = vmatpush1.msra.mxu0 0.0
  %462 = vmatprep.subr.mxu0 0.0
  %463 = vmatpush1.msra.mxu0 0.0
  %464 = vmatprep.subr.mxu0 0.0
  %465 = vmatpush1.msra.mxu0 0.0
  %466 = vmatprep.subr.mxu0 0.0
  %467 = vmatpush1.msra.mxu0 0.0
  %468 = vmatprep.subr.mxu0 0.0
  %469 = vmatpush1.msra.mxu0 0.0
  %470 = vmatprep.subr.mxu0 0.0
  %471 = vmatpush1.msra.mxu0 0.0
  %472 = vmatprep.subr.mxu0 0.0
  %473 = vmatpush1.msra.mxu0 0.0
  %474 = vmatprep.subr.mxu0 0.0
  %475 = vmatpush1.msra.mxu0 0.0
  %476 = vmatprep.subr.mxu0 0.0
  %477 = vmatpush1.msra.mxu0 0.0
  %478 = vmatprep.subr.mxu0 0.0
  %479 = vmatpush1.msra.mxu0 0.0
  %480 = vmatprep.subr.mxu0 0.0
  %481 = vmatpush1.msra.mxu0 0.0
  %482 = vmatprep.subr.mxu0 0.0
  %483 = vmatpush1.msra.mxu0 0.0
  %484 = vmatprep.subr.mxu0 0.0
  %485 = vmatpush1.msra.mxu0 0.0
  %486 = vmatprep.subr.mxu0 0.0
  %487 = vmatpush1.msra.mxu0 0.0
  %488 = vmatprep.subr.mxu0 0.0
  %489 = vmatpush1.msra.mxu0 0.0
  %490 = vmatprep.subr.mxu0 0.0
  %491 = vmatpush1.msra.mxu0 0.0
  %492 = vmatprep.subr.mxu0 0.0
  %493 = vmatpush1.msra.mxu0 0.0
  %494 = vmatprep.subr.mxu0 0.0
  %495 = vmatpush1.msra.mxu0 0.0
  %496 = vmatprep.subr.mxu0 0.0
  %497 = vmatpush1.msra.mxu0 0.0
  %498 = vmatprep.subr.mxu0 0.0
  %499 = vmatpush1.msra.mxu0 0.0
  %500 = vmatprep.subr.mxu0 0.0
  %501 = vmatpush1.msra.mxu0 0.0
  %502 = vmatprep.mubr.f32.mxu0 0.0
  %503 = vmatmul.mubr.f32.gmra.mrb[0].mxu0 %v436
  %v504 = vpop.f32.mrb[0].mxu0
  %v505 = vadd.f32 0.0, %v504
  %v506 = vpop.f32.mrb[0].mxu0
  %507 = vdwg.mxu0
  %v508 = vld [vmem:[%s9] sm:$0xff]
  %v509 = vmul.f32 %v505, %v508
  %v510 = vpack.c.bf16 %v509, %v509
  %v511 = vld [vmem:[%s16] sm:$0xf]
  %v512 = vld [vmem:[%s16 + $0x4] sm:$0xf]
  %v513 = vld [vmem:[%s16 + $0x8] sm:$0xf]
  %v514 = vld [vmem:[%s16 + $0xc] sm:$0xf]
  %v515 = vld [vmem:[%s16 + $0x10] sm:$0xf]
  %v516 = vld [vmem:[%s16 + $0x14] sm:$0xf]
  %v517 = vld [vmem:[%s16 + $0x18] sm:$0xf]
  %v518 = vld [vmem:[%s16 + $0x1c] sm:$0xf]
  %v519 = vld [vmem:[%s16 + $0x20] sm:$0xf]
  %v520 = vld [vmem:[%s16 + $0x24] sm:$0xf]
  %v521 = vld [vmem:[%s16 + $0x28] sm:$0xf]
  %v522 = vld [vmem:[%s16 + $0x2c] sm:$0xf]
  %v523 = vld [vmem:[%s16 + $0x30] sm:$0xf]
  %v524 = vld [vmem:[%s16 + $0x34] sm:$0xf]
  %v525 = vld [vmem:[%s16 + $0x38] sm:$0xf]
  %v526 = vld [vmem:[%s16 + $0x3c] sm:$0xf]
  %v527 = vld [vmem:[%s17] sm:$0x1]
  %v529 = vlaneseq
  %v530 = vshrl.u32 %v529, 7
  %v531 = vsub.s32 0, %v530
  %v532 = vrot.slane %v527, %v531
  %v550 = vunpack.c.l.b16 %v511
  %v551 = vunpack.c.l.b16 %v512
  %v552 = vunpack.c.l.b16 %v513
  %v553 = vunpack.c.l.b16 %v514
  %v554 = vunpack.c.l.b16 %v515
  %v555 = vunpack.c.l.b16 %v516
  %v556 = vunpack.c.l.b16 %v517
  %v557 = vunpack.c.l.b16 %v518
  %v558 = vunpack.c.l.b16 %v519
  %v559 = vunpack.c.l.b16 %v520
  %v560 = vunpack.c.l.b16 %v521
  %v561 = vunpack.c.l.b16 %v522
  %v562 = vunpack.c.l.b16 %v523
  %v563 = vunpack.c.l.b16 %v524
  %v564 = vunpack.c.l.b16 %v525
  %v565 = vunpack.c.l.b16 %v526
  %v566 = vpack.c.b16 %v551, %v550
  %v567 = vpack.c.b16 %v553, %v552
  %v568 = vpack.c.b16 %v555, %v554
  %v569 = vpack.c.b16 %v557, %v556
  %v570 = vpack.c.b16 %v559, %v558
  %v571 = vpack.c.b16 %v561, %v560
  %v572 = vpack.c.b16 %v563, %v562
  %v573 = vpack.c.b16 %v565, %v564
  %582 = vmatprep.subr.bf16.mxu0 0
  %583 = vmatpush1.bf16.msra.mxu0 %v566
  %584 = vmatprep.subr.bf16.mxu0 0
  %585 = vmatpush1.bf16.msra.mxu0 %v567
  %586 = vmatprep.subr.bf16.mxu0 0
  %587 = vmatpush1.bf16.msra.mxu0 %v568
  %588 = vmatprep.subr.bf16.mxu0 0
  %589 = vmatpush1.bf16.msra.mxu0 %v569
  %590 = vmatprep.subr.bf16.mxu0 0
  %591 = vmatpush1.bf16.msra.mxu0 %v570
  %592 = vmatprep.subr.bf16.mxu0 0
  %593 = vmatpush1.bf16.msra.mxu0 %v571
  %594 = vmatprep.subr.bf16.mxu0 0
  %595 = vmatpush1.bf16.msra.mxu0 %v572
  %596 = vmatprep.subr.bf16.mxu0 0
  %597 = vmatpush1.bf16.msra.mxu0 %v573
  %598 = vmatprep.subr.bf16.mxu0 0
  %599 = vmatpush1.bf16.msra.mxu0 0
  %600 = vmatprep.subr.bf16.mxu0 0
  %601 = vmatpush1.bf16.msra.mxu0 0
  %602 = vmatprep.subr.bf16.mxu0 0
  %603 = vmatpush1.bf16.msra.mxu0 0
  %604 = vmatprep.subr.bf16.mxu0 0
  %605 = vmatpush1.bf16.msra.mxu0 0
  %606 = vmatprep.subr.bf16.mxu0 0
  %607 = vmatpush1.bf16.msra.mxu0 0
  %608 = vmatprep.subr.bf16.mxu0 0
  %609 = vmatpush1.bf16.msra.mxu0 0
  %610 = vmatprep.subr.bf16.mxu0 0
  %611 = vmatpush1.bf16.msra.mxu0 0
  %612 = vmatprep.subr.bf16.mxu0 0
  %613 = vmatpush1.bf16.msra.mxu0 0
  %614 = vmatprep.mubr.bf16.mxu0 0
  %615 = vmatmul.mubr.bf16.gmra.mrb[0].mxu0 %v510
  %v616 = vpop.f32.mrb[0].mxu0
  %v617 = vadd.f32 %v532, %v616
  %v618 = vpop.f32.mrb[0].mxu0
  %v619 = vpop.f32.mrb[0].mxu0
  %v620 = vpop.f32.mrb[0].mxu0
  %621 = vdwg.mxu0
  %622 = vst [vmem:[%s18] sm:$0xff] %v617
  // Predicated region
  $region68: #{gnn_forward.5} parent=0 // pred_check
    _
  $region69: #{gnn_forward.5} parent=0 // pred_check_branch
    %624 = sbr.rel (0) target = $region71
  $region70: #{gnn_forward.5} parent=0 // pred_region
    _
  $region71: #{gnn_forward.5} parent=0 // pred_fallthru
    _
  // Predicated region
  $region72: #{gnn_forward.5} parent=0 // pred_check
    _
  $region73: #{gnn_forward.5} parent=0 // pred_check_branch
    %626 = sbr.rel (0) target = $region75
  $region74: #{gnn_forward.5} parent=0 // pred_region
    _
  $region75: #{gnn_forward.5} parent=0 // pred_fallthru
    _

// kernel: gnn_forward.3
$region0: #{gnn_forward.3}
  #allocation0 [shape = 'u32[]', space=smem, size = 0x4, offset = 0x4, fixed_abs, tag = 'smem constant byte address 0x4 - core index']
  #allocation1 [shape = 'u32[144,128]{1,0:T(1,128)}', space=vmem, size = 0x12000, scoped, tag = 'internal scratch']
  #allocation2 [shape = 'f32[16,128]{1,0:T(8,128)}', space=vmem, size = 0x2000, scoped, tag = 'scratch operand']
  #allocation3 [shape = 'f32[16,128]{1,0:T(8,128)}', space=vmem, size = 0x2000, scoped, tag = 'scratch operand']
  #allocation4 [shape = 's32[1]{0}', space=sflag, size = 0x4, scoped, tag = 'scoped memory for gnn_forward.3']
  #allocation5 [shape = 'u8[512]{0}', space=smem, size = 0x200, scoped, tag = 'prefetched SMEM operand 0']
  #allocation6 [shape = 'u8[512]{0}', space=smem, size = 0x200, scoped, tag = 'prefetched SMEM operand 1']
  #allocation7 [shape = 'u8[512]{0}', space=smem, size = 0x200, scoped, tag = 'prefetched SMEM operand 2']
  #allocation8 [shape = 'u8[512]{0}', space=smem, size = 0x200, scoped, tag = 'prefetched SMEM operand 3']
  #allocation9 [shape = 'u8[512]{0}', space=smem, size = 0x200, scoped, tag = 'prefetched SMEM operand 4']
  %s0 = inlined_call_operand.vmem [shape: s32[2], index: 0, kind: input, shape index: {}]
  %s1 = inlined_call_operand.vmem [shape: s32[24], index: 1, kind: input, shape index: {}]
  %s2 = inlined_call_operand.vmem [shape: s32[17], index: 2, kind: input, shape index: {}]
  %s3 = inlined_call_operand.vmem [shape: s32[24], index: 3, kind: input, shape index: {}]
  %s4 = inlined_call_operand.vmem [shape: s32[24], index: 4, kind: input, shape index: {}]
  %s5 = inlined_call_operand.vmem [shape: bf16[16,128], index: 5, kind: input, shape index: {}]
  %s6 = inlined_call_operand.vmem [shape: f32[8,128], index: 6, kind: input, shape index: {}]
  %s7 = inlined_call_operand.vmem [shape: f32[16,8], index: 7, kind: input, shape index: {}]
  %s8 = inlined_call_operand.vmem [shape: f32[8,16], index: 8, kind: input, shape index: {}]
  %s9 = inlined_call_operand.vmem [shape: f32[8,128], index: 9, kind: input, shape index: {}]
  %s10 = inlined_call_operand.vmem [shape: f32[8,128], index: 10, kind: input, shape index: {}]
  %s11 = inlined_call_operand.vmem [shape: bf16[128,128], index: 11, kind: input, shape index: {}]
  %s12 = inlined_call_operand.vmem [shape: f32[1,128], index: 12, kind: input, shape index: {}]
  %s13 = inlined_call_operand.vmem [shape: bf16[128,128], index: 13, kind: input, shape index: {}]
  %s14 = inlined_call_operand.vmem [shape: f32[1,128], index: 14, kind: input, shape index: {}]
  %s15 = inlined_call_operand.vmem [shape: bf16[128,128], index: 15, kind: input, shape index: {}]
  %s16 = inlined_call_operand.vmem [shape: f32[1,128], index: 16, kind: input, shape index: {}]
  %s17 = inlined_call_operand.vmem [shape: bf16[128,128], index: 17, kind: input, shape index: {}]
  %s18 = inlined_call_operand.vmem [shape: f32[1,128], index: 18, kind: input, shape index: {}]
  %s19 = inlined_call_operand.vmem [shape: bf16[16,128], index: 19, kind: output, shape index: {0}]
  %s20 = inlined_call_operand.vmem [shape: f32[8,128], index: 20, kind: output, shape index: {1}]
  %21 = xla_tuple %s19, %s20
  %s22 = sld [smem:[#allocation0]]
  $region88: #{gnn_forward.3} parent=0
    _
  %s24 = ssub.s32 1, %s22
  %s25 = scalar_select 0, %s24, %s22
  %s26 = sshll.u32 %s0, 4
  %s27 = int_to_ptr.vmem [resolvable:$true] %s26
  %29 = dma.vmem_to_smem %s27, 16, [#allocation5], [#allocation4]
  %s30 = sshll.u32 %s1, 4
  %s31 = int_to_ptr.vmem [resolvable:$true] %s30
  %33 = dma.vmem_to_smem %s31, 16, [#allocation6], [#allocation4]
  %s34 = sshll.u32 %s2, 4
  %s35 = int_to_ptr.vmem [resolvable:$true] %s34
  %37 = dma.vmem_to_smem %s35, 16, [#allocation7], [#allocation4]
  %s38 = sshll.u32 %s3, 4
  %s39 = int_to_ptr.vmem [resolvable:$true] %s38
  %41 = dma.vmem_to_smem %s39, 16, [#allocation8], [#allocation4]
  %s42 = sshll.u32 %s4, 4
  %s43 = int_to_ptr.vmem [resolvable:$true] %s42
  %45 = dma.vmem_to_smem %s43, 16, [#allocation9], [#allocation4]
  %46 = dma.done [#allocation4], 80
  %47 = sfence
  // Predicated region
  $region2: #{gnn_forward.3} parent=0 // pred_check
    _
  $region3: #{gnn_forward.3} parent=0 // pred_check_branch
    %49 = sbr.rel (0) target = $region5
  $region4: #{gnn_forward.3} parent=0 // pred_region
    _
  $region5: #{gnn_forward.3} parent=0 // pred_fallthru
    _
  // Predicated region
  $region6: #{gnn_forward.3} parent=0 // pred_check
    _
  $region7: #{gnn_forward.3} parent=0 // pred_check_branch
    %51 = sbr.rel (0) target = $region9
  $region8: #{gnn_forward.3} parent=0 // pred_region
    _
  $region9: #{gnn_forward.3} parent=0 // pred_fallthru
    _
  // Predicated region
  $region10: #{gnn_forward.3} parent=0 // pred_check
    _
  $region11: #{gnn_forward.3} parent=0 // pred_check_branch
    %53 = sbr.rel (0) target = $region13
  $region12: #{gnn_forward.3} parent=0 // pred_region
    _
  $region13: #{gnn_forward.3} parent=0 // pred_fallthru
    _
  // Predicated region
  $region14: #{gnn_forward.3} parent=0 // pred_check
    _
  $region15: #{gnn_forward.3} parent=0 // pred_check_branch
    %55 = sbr.rel (0) target = $region17
  $region16: #{gnn_forward.3} parent=0 // pred_region
    _
  $region17: #{gnn_forward.3} parent=0 // pred_fallthru
    _
  // Predicated region
  $region18: #{gnn_forward.3} parent=0 // pred_check
    _
  $region19: #{gnn_forward.3} parent=0 // pred_check_branch
    %57 = sbr.rel (0) target = $region21
  $region20: #{gnn_forward.3} parent=0 // pred_region
    _
  $region21: #{gnn_forward.3} parent=0 // pred_fallthru
    _
  // Predicated region
  $region22: #{gnn_forward.3} parent=0 // pred_check
    _
  $region23: #{gnn_forward.3} parent=0 // pred_check_branch
    %59 = sbr.rel (0) target = $region25
  $region24: #{gnn_forward.3} parent=0 // pred_region
    _
  $region25: #{gnn_forward.3} parent=0 // pred_fallthru
    _
  // Predicated region
  $region26: #{gnn_forward.3} parent=0 // pred_check
    _
  $region27: #{gnn_forward.3} parent=0 // pred_check_branch
    %61 = sbr.rel (0) target = $region29
  $region28: #{gnn_forward.3} parent=0 // pred_region
    _
  $region29: #{gnn_forward.3} parent=0 // pred_fallthru
    _
  // Predicated region
  $region30: #{gnn_forward.3} parent=0 // pred_check
    _
  $region31: #{gnn_forward.3} parent=0 // pred_check_branch
    %63 = sbr.rel (0) target = $region33
  $region32: #{gnn_forward.3} parent=0 // pred_region
    _
  $region33: #{gnn_forward.3} parent=0 // pred_fallthru
    _
  // Predicated region
  $region34: #{gnn_forward.3} parent=0 // pred_check
    _
  $region35: #{gnn_forward.3} parent=0 // pred_check_branch
    %65 = sbr.rel (0) target = $region37
  $region36: #{gnn_forward.3} parent=0 // pred_region
    _
  $region37: #{gnn_forward.3} parent=0 // pred_fallthru
    _
  // Predicated region
  $region38: #{gnn_forward.3} parent=0 // pred_check
    _
  $region39: #{gnn_forward.3} parent=0 // pred_check_branch
    %67 = sbr.rel (0) target = $region41
  $region40: #{gnn_forward.3} parent=0 // pred_region
    _
  $region41: #{gnn_forward.3} parent=0 // pred_fallthru
    _
  // Predicated region
  $region42: #{gnn_forward.3} parent=0 // pred_check
    _
  $region43: #{gnn_forward.3} parent=0 // pred_check_branch
    %69 = sbr.rel (0) target = $region45
  $region44: #{gnn_forward.3} parent=0 // pred_region
    _
  $region45: #{gnn_forward.3} parent=0 // pred_fallthru
    _
  // Predicated region
  $region46: #{gnn_forward.3} parent=0 // pred_check
    _
  $region47: #{gnn_forward.3} parent=0 // pred_check_branch
    %71 = sbr.rel (0) target = $region49
  $region48: #{gnn_forward.3} parent=0 // pred_region
    _
  $region49: #{gnn_forward.3} parent=0 // pred_fallthru
    _
  // Predicated region
  $region50: #{gnn_forward.3} parent=0 // pred_check
    _
  $region51: #{gnn_forward.3} parent=0 // pred_check_branch
    %73 = sbr.rel (0) target = $region53
  $region52: #{gnn_forward.3} parent=0 // pred_region
    _
  $region53: #{gnn_forward.3} parent=0 // pred_fallthru
    _
  // Predicated region
  $region54: #{gnn_forward.3} parent=0 // pred_check
    _
  $region55: #{gnn_forward.3} parent=0 // pred_check_branch
    %75 = sbr.rel (0) target = $region57
  $region56: #{gnn_forward.3} parent=0 // pred_region
    _
  $region57: #{gnn_forward.3} parent=0 // pred_fallthru
    _
  %s77 = sld [smem:[#allocation5]]
  %v78 = vld [vmem:[%s5] sm:$0xf]
  %v79 = vld [vmem:[%s5 + $0x4] sm:$0xf]
  %v80 = vunpack.c.l.bf16 %v78
  %v81 = vunpack.c.l.bf16 %v79
  %v82 = vld [vmem:[%s7] sm:$0xff]
  %v83 = vld [vmem:[%s7 + $0x8] sm:$0xff]
  %v84 = vld [vmem:[%s6] sm:$0xff]
  %vm85 = vcmask 64512
  %v87 = vsel %vm85, %v82, 0
  %v90 = vsel %vm85, %v83, 0
  %92 = vmatprep.subr.mxu0 0.0
  %93 = vmatpush1.msra.mxu0 %v84
  %94 = vmatprep.subr.mxu0 0.0
  %95 = vmatpush1.msra.mxu0 0.0
  %96 = vmatprep.subr.mxu0 0.0
  %97 = vmatpush1.msra.mxu0 0.0
  %98 = vmatprep.subr.mxu0 0.0
  %99 = vmatpush1.msra.mxu0 0.0
  %100 = vmatprep.subr.mxu0 0.0
  %101 = vmatpush1.msra.mxu0 0.0
  %102 = vmatprep.subr.mxu0 0.0
  %103 = vmatpush1.msra.mxu0 0.0
  %104 = vmatprep.subr.mxu0 0.0
  %105 = vmatpush1.msra.mxu0 0.0
  %106 = vmatprep.subr.mxu0 0.0
  %107 = vmatpush1.msra.mxu0 0.0
  %108 = vmatprep.subr.mxu0 0.0
  %109 = vmatpush1.msra.mxu0 0.0
  %110 = vmatprep.subr.mxu0 0.0
  %111 = vmatpush1.msra.mxu0 0.0
  %112 = vmatprep.subr.mxu0 0.0
  %113 = vmatpush1.msra.mxu0 0.0
  %114 = vmatprep.subr.mxu0 0.0
  %115 = vmatpush1.msra.mxu0 0.0
  %116 = vmatprep.subr.mxu0 0.0
  %117 = vmatpush1.msra.mxu0 0.0
  %118 = vmatprep.subr.mxu0 0.0
  %119 = vmatpush1.msra.mxu0 0.0
  %120 = vmatprep.subr.mxu0 0.0
  %121 = vmatpush1.msra.mxu0 0.0
  %122 = vmatprep.subr.mxu0 0.0
  %123 = vmatpush1.msra.mxu0 0.0
  %124 = vmatprep.subr.mxu0 0.0
  %125 = vmatpush1.msra.mxu0 0.0
  %126 = vmatprep.subr.mxu0 0.0
  %127 = vmatpush1.msra.mxu0 0.0
  %128 = vmatprep.subr.mxu0 0.0
  %129 = vmatpush1.msra.mxu0 0.0
  %130 = vmatprep.subr.mxu0 0.0
  %131 = vmatpush1.msra.mxu0 0.0
  %132 = vmatprep.subr.mxu0 0.0
  %133 = vmatpush1.msra.mxu0 0.0
  %134 = vmatprep.subr.mxu0 0.0
  %135 = vmatpush1.msra.mxu0 0.0
  %136 = vmatprep.subr.mxu0 0.0
  %137 = vmatpush1.msra.mxu0 0.0
  %138 = vmatprep.subr.mxu0 0.0
  %139 = vmatpush1.msra.mxu0 0.0
  %140 = vmatprep.subr.mxu0 0.0
  %141 = vmatpush1.msra.mxu0 0.0
  %142 = vmatprep.subr.mxu0 0.0
  %143 = vmatpush1.msra.mxu0 0.0
  %144 = vmatprep.subr.mxu0 0.0
  %145 = vmatpush1.msra.mxu0 0.0
  %146 = vmatprep.subr.mxu0 0.0
  %147 = vmatpush1.msra.mxu0 0.0
  %148 = vmatprep.subr.mxu0 0.0
  %149 = vmatpush1.msra.mxu0 0.0
  %150 = vmatprep.subr.mxu0 0.0
  %151 = vmatpush1.msra.mxu0 0.0
  %152 = vmatprep.subr.mxu0 0.0
  %153 = vmatpush1.msra.mxu0 0.0
  %154 = vmatprep.subr.mxu0 0.0
  %155 = vmatpush1.msra.mxu0 0.0
  %156 = vmatprep.mubr.f32.mxu0 0.0
  %157 = vmatmul.mubr.f32.gmra.mrb[0].mxu0 %v87
  %v158 = vpop.f32.mrb[0].mxu0
  %v159 = vadd.f32 0.0, %v158
  %v160 = vpop.f32.mrb[0].mxu0
  %161 = vmatprep.mubr.f32.mxu0 0.0
  %162 = vmatmul.mubr.f32.gmra.mrb[0].mxu0 %v90
  %v163 = vpop.f32.mrb[0].mxu0
  %v164 = vadd.f32 0.0, %v163
  %v165 = vpop.f32.mrb[0].mxu0
  %166 = vdwg.mxu0
  %v167 = vadd.f32 %v80, %v159
  %v168 = vadd.f32 %v81, %v164
  %169 = vst [vmem:[#allocation2] sm:$0xff] %v167
  %170 = vst [vmem:[#allocation2 + $0x8] sm:$0xff] %v168
  %171 = vst [vmem:[#allocation3] sm:$0xff] 0.0
  %172 = vst [vmem:[#allocation3 + $0x8] sm:$0xff] 0.0
  // While loop
  $region58: #{gnn_forward.3} parent=0 // loop_pre_header
    _
  $region59: #{gnn_forward.3} parent=0 // loop_header
    %s174 = sphi 0, %s176
    %p175 = scmp.ge.s32.totalorder %s174, %s77
  $region60: #{gnn_forward.3} parent=0 // loop_header_branch
    %178 = sbr.rel (%p175) target = $region64
  $region61: #{gnn_forward.3} parent=0 // loop_body
    %s179 = sld [smem:[#allocation7 + %s174]]
    %s180 = sadd.s32 %s174, 1
    %s181 = sld [smem:[#allocation7 + %s180]]
    // While loop
    $region65: #{gnn_forward.3} parent=61 // loop_pre_header
      _
    $region66: #{gnn_forward.3} parent=61 // loop_header
      %s183 = sphi %s179, %s185
      %p184 = scmp.ge.s32.totalorder %s183, %s181
      %v188 = vphi 0.0, %v201
    $region67: #{gnn_forward.3} parent=61 // loop_header_branch
      %187 = sbr.rel (%p184) target = $region71
    $region68: #{gnn_forward.3} parent=61 // loop_body
      %s189 = sld [smem:[#allocation6 + %s183]]
      %s190 = scalar_lea.vmem [#allocation2], %s189
      %v191 = vld [vmem:[%s190] sm:$0x1]
      %s192 = sld [smem:[#allocation8 + %s183]]
      %s193 = scalar_lea.vmem %s9, %s192
      %v194 = vld [vmem:[%s193] sm:$0x1]
      %v195 = vadd.f32 %v191, %v194
      %s196 = sld [smem:[#allocation9 + %s183]]
      %s197 = scalar_lea.vmem %s10, %s196
      %v198 = vld [vmem:[%s197] sm:$0x1]
      %v199 = vadd.f32 %v195, %v198
      %v200 = vmax.f32 %v199, 0.0
      %v201 = vadd.f32 %v188, %v200
    $region69: #{gnn_forward.3} parent=61 // loop_footer
      %s185 = sadd.s32 %s183, 1
    $region70: #{gnn_forward.3} parent=61 // loop_footer_branch
      %182 = sbr.rel target = $region66
    $region71: #{gnn_forward.3} parent=61 // loop_exit
      _
    %s202 = scalar_lea.vmem [#allocation3], %s174
    %203 = vst [vmem:[%s202] sm:$0x1] %v188
  $region62: #{gnn_forward.3} parent=0 // loop_footer
    %s176 = sadd.s32 %s174, 1
  $region63: #{gnn_forward.3} parent=0 // loop_footer_branch
    %173 = sbr.rel target = $region59
  $region64: #{gnn_forward.3} parent=0 // loop_exit
    _
  %v204 = vld [vmem:[#allocation2] sm:$0xff]
  %v205 = vld [vmem:[#allocation2 + $0x8] sm:$0xff]
  %v206 = vld [vmem:[#allocation3] sm:$0xff]
  %v207 = vld [vmem:[#allocation3 + $0x8] sm:$0xff]
  %v208 = vadd.f32 %v204, %v206
  %v209 = vadd.f32 %v205, %v207
  %v210 = vpack.c.bf16 %v209, %v208
  %v211 = vld [vmem:[%s11] sm:$0xf]
  %v212 = vld [vmem:[%s11 + $0x4] sm:$0xf]
  %v213 = vld [vmem:[%s11 + $0x8] sm:$0xf]
  %v214 = vld [vmem:[%s11 + $0xc] sm:$0xf]
  %v215 = vld [vmem:[%s11 + $0x10] sm:$0xf]
  %v216 = vld [vmem:[%s11 + $0x14] sm:$0xf]
  %v217 = vld [vmem:[%s11 + $0x18] sm:$0xf]
  %v218 = vld [vmem:[%s11 + $0x1c] sm:$0xf]
  %v219 = vld [vmem:[%s11 + $0x20] sm:$0xf]
  %v220 = vld [vmem:[%s11 + $0x24] sm:$0xf]
  %v221 = vld [vmem:[%s11 + $0x28] sm:$0xf]
  %v222 = vld [vmem:[%s11 + $0x2c] sm:$0xf]
  %v223 = vld [vmem:[%s11 + $0x30] sm:$0xf]
  %v224 = vld [vmem:[%s11 + $0x34] sm:$0xf]
  %v225 = vld [vmem:[%s11 + $0x38] sm:$0xf]
  %v226 = vld [vmem:[%s11 + $0x3c] sm:$0xf]
  %v227 = vld [vmem:[%s12] sm:$0x1]
  %v229 = vlaneseq
  %v230 = vshrl.u32 %v229, 7
  %v231 = vsub.s32 0, %v230
  %v232 = vrot.slane %v227, %v231
  %v250 = vunpack.c.l.b16 %v211
  %v251 = vunpack.c.l.b16 %v212
  %v252 = vunpack.c.l.b16 %v213
  %v253 = vunpack.c.l.b16 %v214
  %v254 = vunpack.c.l.b16 %v215
  %v255 = vunpack.c.l.b16 %v216
  %v256 = vunpack.c.l.b16 %v217
  %v257 = vunpack.c.l.b16 %v218
  %v258 = vunpack.c.l.b16 %v219
  %v259 = vunpack.c.l.b16 %v220
  %v260 = vunpack.c.l.b16 %v221
  %v261 = vunpack.c.l.b16 %v222
  %v262 = vunpack.c.l.b16 %v223
  %v263 = vunpack.c.l.b16 %v224
  %v264 = vunpack.c.l.b16 %v225
  %v265 = vunpack.c.l.b16 %v226
  %v266 = vpack.c.b16 %v251, %v250
  %v267 = vpack.c.b16 %v253, %v252
  %v268 = vpack.c.b16 %v255, %v254
  %v269 = vpack.c.b16 %v257, %v256
  %v270 = vpack.c.b16 %v259, %v258
  %v271 = vpack.c.b16 %v261, %v260
  %v272 = vpack.c.b16 %v263, %v262
  %v273 = vpack.c.b16 %v265, %v264
  %282 = vmatprep.subr.bf16.mxu0 0
  %283 = vmatpush1.bf16.msra.mxu0 %v266
  %284 = vmatprep.subr.bf16.mxu0 0
  %285 = vmatpush1.bf16.msra.mxu0 %v267
  %286 = vmatprep.subr.bf16.mxu0 0
  %287 = vmatpush1.bf16.msra.mxu0 %v268
  %288 = vmatprep.subr.bf16.mxu0 0
  %289 = vmatpush1.bf16.msra.mxu0 %v269
  %290 = vmatprep.subr.bf16.mxu0 0
  %291 = vmatpush1.bf16.msra.mxu0 %v270
  %292 = vmatprep.subr.bf16.mxu0 0
  %293 = vmatpush1.bf16.msra.mxu0 %v271
  %294 = vmatprep.subr.bf16.mxu0 0
  %295 = vmatpush1.bf16.msra.mxu0 %v272
  %296 = vmatprep.subr.bf16.mxu0 0
  %297 = vmatpush1.bf16.msra.mxu0 %v273
  %298 = vmatprep.subr.bf16.mxu0 0
  %299 = vmatpush1.bf16.msra.mxu0 0
  %300 = vmatprep.subr.bf16.mxu0 0
  %301 = vmatpush1.bf16.msra.mxu0 0
  %302 = vmatprep.subr.bf16.mxu0 0
  %303 = vmatpush1.bf16.msra.mxu0 0
  %304 = vmatprep.subr.bf16.mxu0 0
  %305 = vmatpush1.bf16.msra.mxu0 0
  %306 = vmatprep.subr.bf16.mxu0 0
  %307 = vmatpush1.bf16.msra.mxu0 0
  %308 = vmatprep.subr.bf16.mxu0 0
  %309 = vmatpush1.bf16.msra.mxu0 0
  %310 = vmatprep.subr.bf16.mxu0 0
  %311 = vmatpush1.bf16.msra.mxu0 0
  %312 = vmatprep.subr.bf16.mxu0 0
  %313 = vmatpush1.bf16.msra.mxu0 0
  %314 = vmatprep.mubr.bf16.mxu0 0
  %315 = vmatmul.mubr.bf16.gmra.mrb[0].mxu0 %v210
  %v316 = vpop.f32.mrb[0].mxu0
  %v317 = vadd.f32 %v232, %v316
  %v318 = vpop.f32.mrb[0].mxu0
  %v319 = vpop.f32.mrb[0].mxu0
  %v320 = vadd.f32 %v232, %v319
  %v321 = vpop.f32.mrb[0].mxu0
  %322 = vdwg.mxu0
  %v323 = vmax.f32 %v317, 0.0
  %v324 = vmax.f32 %v320, 0.0
  %v325 = vpack.c.bf16 %v324, %v323
  %v326 = vld [vmem:[%s13] sm:$0xf]
  %v327 = vld [vmem:[%s13 + $0x4] sm:$0xf]
  %v328 = vld [vmem:[%s13 + $0x8] sm:$0xf]
  %v329 = vld [vmem:[%s13 + $0xc] sm:$0xf]
  %v330 = vld [vmem:[%s13 + $0x10] sm:$0xf]
  %v331 = vld [vmem:[%s13 + $0x14] sm:$0xf]
  %v332 = vld [vmem:[%s13 + $0x18] sm:$0xf]
  %v333 = vld [vmem:[%s13 + $0x1c] sm:$0xf]
  %v334 = vld [vmem:[%s13 + $0x20] sm:$0xf]
  %v335 = vld [vmem:[%s13 + $0x24] sm:$0xf]
  %v336 = vld [vmem:[%s13 + $0x28] sm:$0xf]
  %v337 = vld [vmem:[%s13 + $0x2c] sm:$0xf]
  %v338 = vld [vmem:[%s13 + $0x30] sm:$0xf]
  %v339 = vld [vmem:[%s13 + $0x34] sm:$0xf]
  %v340 = vld [vmem:[%s13 + $0x38] sm:$0xf]
  %v341 = vld [vmem:[%s13 + $0x3c] sm:$0xf]
  %v342 = vld [vmem:[%s14] sm:$0x1]
  %v344 = vlaneseq
  %v345 = vshrl.u32 %v344, 7
  %v346 = vsub.s32 0, %v345
  %v347 = vrot.slane %v342, %v346
  %v365 = vunpack.c.l.b16 %v326
  %v366 = vunpack.c.l.b16 %v327
  %v367 = vunpack.c.l.b16 %v328
  %v368 = vunpack.c.l.b16 %v329
  %v369 = vunpack.c.l.b16 %v330
  %v370 = vunpack.c.l.b16 %v331
  %v371 = vunpack.c.l.b16 %v332
  %v372 = vunpack.c.l.b16 %v333
  %v373 = vunpack.c.l.b16 %v334
  %v374 = vunpack.c.l.b16 %v335
  %v375 = vunpack.c.l.b16 %v336
  %v376 = vunpack.c.l.b16 %v337
  %v377 = vunpack.c.l.b16 %v338
  %v378 = vunpack.c.l.b16 %v339
  %v379 = vunpack.c.l.b16 %v340
  %v380 = vunpack.c.l.b16 %v341
  %v381 = vpack.c.b16 %v366, %v365
  %v382 = vpack.c.b16 %v368, %v367
  %v383 = vpack.c.b16 %v370, %v369
  %v384 = vpack.c.b16 %v372, %v371
  %v385 = vpack.c.b16 %v374, %v373
  %v386 = vpack.c.b16 %v376, %v375
  %v387 = vpack.c.b16 %v378, %v377
  %v388 = vpack.c.b16 %v380, %v379
  %397 = vmatprep.subr.bf16.mxu0 0
  %398 = vmatpush1.bf16.msra.mxu0 %v381
  %399 = vmatprep.subr.bf16.mxu0 0
  %400 = vmatpush1.bf16.msra.mxu0 %v382
  %401 = vmatprep.subr.bf16.mxu0 0
  %402 = vmatpush1.bf16.msra.mxu0 %v383
  %403 = vmatprep.subr.bf16.mxu0 0
  %404 = vmatpush1.bf16.msra.mxu0 %v384
  %405 = vmatprep.subr.bf16.mxu0 0
  %406 = vmatpush1.bf16.msra.mxu0 %v385
  %407 = vmatprep.subr.bf16.mxu0 0
  %408 = vmatpush1.bf16.msra.mxu0 %v386
  %409 = vmatprep.subr.bf16.mxu0 0
  %410 = vmatpush1.bf16.msra.mxu0 %v387
  %411 = vmatprep.subr.bf16.mxu0 0
  %412 = vmatpush1.bf16.msra.mxu0 %v388
  %413 = vmatprep.subr.bf16.mxu0 0
  %414 = vmatpush1.bf16.msra.mxu0 0
  %415 = vmatprep.subr.bf16.mxu0 0
  %416 = vmatpush1.bf16.msra.mxu0 0
  %417 = vmatprep.subr.bf16.mxu0 0
  %418 = vmatpush1.bf16.msra.mxu0 0
  %419 = vmatprep.subr.bf16.mxu0 0
  %420 = vmatpush1.bf16.msra.mxu0 0
  %421 = vmatprep.subr.bf16.mxu0 0
  %422 = vmatpush1.bf16.msra.mxu0 0
  %423 = vmatprep.subr.bf16.mxu0 0
  %424 = vmatpush1.bf16.msra.mxu0 0
  %425 = vmatprep.subr.bf16.mxu0 0
  %426 = vmatpush1.bf16.msra.mxu0 0
  %427 = vmatprep.subr.bf16.mxu0 0
  %428 = vmatpush1.bf16.msra.mxu0 0
  %429 = vmatprep.mubr.bf16.mxu0 0
  %430 = vmatmul.mubr.bf16.gmra.mrb[0].mxu0 %v325
  %v431 = vpop.f32.mrb[0].mxu0
  %v432 = vadd.f32 %v347, %v431
  %v433 = vpop.f32.mrb[0].mxu0
  %v434 = vpop.f32.mrb[0].mxu0
  %v435 = vadd.f32 %v347, %v434
  %v436 = vpop.f32.mrb[0].mxu0
  %437 = vdwg.mxu0
  %v438 = vmax.f32 %v432, 0.0
  %v439 = vmax.f32 %v435, 0.0
  %v440 = vlaneseq
  %v441 = vshrl.u32 %v440, 7
  %v442 = vadd.s32 %v441, 8
  %v443 = vstv %s77
  %vm444 = vcmp.lt.s32.totalorder %v441, %v443
  %vm445 = vcmp.lt.s32.totalorder %v442, %v443
  %v446 = vsel %vm444, %v438, 0.0
  %v447 = vsel %vm445, %v439, 0.0
  %v448 = vpack.c.bf16 %v447, %v446
  %v450 = vunpack.c.l.b16 %v448
  %v451 = vunpack.c.h.b16 %v448
  %v452 = vpack.c.b16 %v450, %v450
  %v453 = vpack.c.b16 %v451, %v451
  %456 = vst [vmem:[%s19] sm:$0xf] %v452
  %457 = vst [vmem:[%s19 + $0x4] sm:$0xf] %v453
  %v458 = vld [vmem:[%s8] sm:$0xff]
  %v459 = vld [vmem:[#allocation2] sm:$0xff]
  %v460 = vld [vmem:[#allocation2 + $0x8] sm:$0xff]
  %v461 = vld [vmem:[%s6] sm:$0xff]
  %vm462 = vcmask 130048
  %v464 = vsel %vm462, %v458, 0
  %466 = vmatprep.subr.mxu0 0.0
  %467 = vmatpush1.msra.mxu0 %v459
  %468 = vmatprep.subr.mxu0 0.0
  %469 = vmatpush1.msra.mxu0 %v460
  %470 = vmatprep.subr.mxu0 0.0
  %471 = vmatpush1.msra.mxu0 0.0
  %472 = vmatprep.subr.mxu0 0.0
  %473 = vmatpush1.msra.mxu0 0.0
  %474 = vmatprep.subr.mxu0 0.0
  %475 = vmatpush1.msra.mxu0 0.0
  %476 = vmatprep.subr.mxu0 0.0
  %477 = vmatpush1.msra.mxu0 0.0
  %478 = vmatprep.subr.mxu0 0.0
  %479 = vmatpush1.msra.mxu0 0.0
  %480 = vmatprep.subr.mxu0 0.0
  %481 = vmatpush1.msra.mxu0 0.0
  %482 = vmatprep.subr.mxu0 0.0
  %483 = vmatpush1.msra.mxu0 0.0
  %484 = vmatprep.subr.mxu0 0.0
  %485 = vmatpush1.msra.mxu0 0.0
  %486 = vmatprep.subr.mxu0 0.0
  %487 = vmatpush1.msra.mxu0 0.0
  %488 = vmatprep.subr.mxu0 0.0
  %489 = vmatpush1.msra.mxu0 0.0
  %490 = vmatprep.subr.mxu0 0.0
  %491 = vmatpush1.msra.mxu0 0.0
  %492 = vmatprep.subr.mxu0 0.0
  %493 = vmatpush1.msra.mxu0 0.0
  %494 = vmatprep.subr.mxu0 0.0
  %495 = vmatpush1.msra.mxu0 0.0
  %496 = vmatprep.subr.mxu0 0.0
  %497 = vmatpush1.msra.mxu0 0.0
  %498 = vmatprep.subr.mxu0 0.0
  %499 = vmatpush1.msra.mxu0 0.0
  %500 = vmatprep.subr.mxu0 0.0
  %501 = vmatpush1.msra.mxu0 0.0
  %502 = vmatprep.subr.mxu0 0.0
  %503 = vmatpush1.msra.mxu0 0.0
  %504 = vmatprep.subr.mxu0 0.0
  %505 = vmatpush1.msra.mxu0 0.0
  %506 = vmatprep.subr.mxu0 0.0
  %507 = vmatpush1.msra.mxu0 0.0
  %508 = vmatprep.subr.mxu0 0.0
  %509 = vmatpush1.msra.mxu0 0.0
  %510 = vmatprep.subr.mxu0 0.0
  %511 = vmatpush1.msra.mxu0 0.0
  %512 = vmatprep.subr.mxu0 0.0
  %513 = vmatpush1.msra.mxu0 0.0
  %514 = vmatprep.subr.mxu0 0.0
  %515 = vmatpush1.msra.mxu0 0.0
  %516 = vmatprep.subr.mxu0 0.0
  %517 = vmatpush1.msra.mxu0 0.0
  %518 = vmatprep.subr.mxu0 0.0
  %519 = vmatpush1.msra.mxu0 0.0
  %520 = vmatprep.subr.mxu0 0.0
  %521 = vmatpush1.msra.mxu0 0.0
  %522 = vmatprep.subr.mxu0 0.0
  %523 = vmatpush1.msra.mxu0 0.0
  %524 = vmatprep.subr.mxu0 0.0
  %525 = vmatpush1.msra.mxu0 0.0
  %526 = vmatprep.subr.mxu0 0.0
  %527 = vmatpush1.msra.mxu0 0.0
  %528 = vmatprep.subr.mxu0 0.0
  %529 = vmatpush1.msra.mxu0 0.0
  %530 = vmatprep.mubr.f32.mxu0 0.0
  %531 = vmatmul.mubr.f32.gmra.mrb[0].mxu0 %v464
  %v532 = vpop.f32.mrb[0].mxu0
  %v533 = vadd.f32 %v461, %v532
  %v534 = vpop.f32.mrb[0].mxu0
  %535 = vdwg.mxu0
  %v536 = vpack.c.bf16 %v533, %v533
  %v537 = vld [vmem:[%s15] sm:$0xf]
  %v538 = vld [vmem:[%s15 + $0x4] sm:$0xf]
  %v539 = vld [vmem:[%s15 + $0x8] sm:$0xf]
  %v540 = vld [vmem:[%s15 + $0xc] sm:$0xf]
  %v541 = vld [vmem:[%s15 + $0x10] sm:$0xf]
  %v542 = vld [vmem:[%s15 + $0x14] sm:$0xf]
  %v543 = vld [vmem:[%s15 + $0x18] sm:$0xf]
  %v544 = vld [vmem:[%s15 + $0x1c] sm:$0xf]
  %v545 = vld [vmem:[%s15 + $0x20] sm:$0xf]
  %v546 = vld [vmem:[%s15 + $0x24] sm:$0xf]
  %v547 = vld [vmem:[%s15 + $0x28] sm:$0xf]
  %v548 = vld [vmem:[%s15 + $0x2c] sm:$0xf]
  %v549 = vld [vmem:[%s15 + $0x30] sm:$0xf]
  %v550 = vld [vmem:[%s15 + $0x34] sm:$0xf]
  %v551 = vld [vmem:[%s15 + $0x38] sm:$0xf]
  %v552 = vld [vmem:[%s15 + $0x3c] sm:$0xf]
  %v553 = vld [vmem:[%s16] sm:$0x1]
  %v555 = vlaneseq
  %v556 = vshrl.u32 %v555, 7
  %v557 = vsub.s32 0, %v556
  %v558 = vrot.slane %v553, %v557
  %v576 = vunpack.c.l.b16 %v537
  %v577 = vunpack.c.l.b16 %v538
  %v578 = vunpack.c.l.b16 %v539
  %v579 = vunpack.c.l.b16 %v540
  %v580 = vunpack.c.l.b16 %v541
  %v581 = vunpack.c.l.b16 %v542
  %v582 = vunpack.c.l.b16 %v543
  %v583 = vunpack.c.l.b16 %v544
  %v584 = vunpack.c.l.b16 %v545
  %v585 = vunpack.c.l.b16 %v546
  %v586 = vunpack.c.l.b16 %v547
  %v587 = vunpack.c.l.b16 %v548
  %v588 = vunpack.c.l.b16 %v549
  %v589 = vunpack.c.l.b16 %v550
  %v590 = vunpack.c.l.b16 %v551
  %v591 = vunpack.c.l.b16 %v552
  %v592 = vpack.c.b16 %v577, %v576
  %v593 = vpack.c.b16 %v579, %v578
  %v594 = vpack.c.b16 %v581, %v580
  %v595 = vpack.c.b16 %v583, %v582
  %v596 = vpack.c.b16 %v585, %v584
  %v597 = vpack.c.b16 %v587, %v586
  %v598 = vpack.c.b16 %v589, %v588
  %v599 = vpack.c.b16 %v591, %v590
  %608 = vmatprep.subr.bf16.mxu0 0
  %609 = vmatpush1.bf16.msra.mxu0 %v592
  %610 = vmatprep.subr.bf16.mxu0 0
  %611 = vmatpush1.bf16.msra.mxu0 %v593
  %612 = vmatprep.subr.bf16.mxu0 0
  %613 = vmatpush1.bf16.msra.mxu0 %v594
  %614 = vmatprep.subr.bf16.mxu0 0
  %615 = vmatpush1.bf16.msra.mxu0 %v595
  %616 = vmatprep.subr.bf16.mxu0 0
  %617 = vmatpush1.bf16.msra.mxu0 %v596
  %618 = vmatprep.subr.bf16.mxu0 0
  %619 = vmatpush1.bf16.msra.mxu0 %v597
  %620 = vmatprep.subr.bf16.mxu0 0
  %621 = vmatpush1.bf16.msra.mxu0 %v598
  %622 = vmatprep.subr.bf16.mxu0 0
  %623 = vmatpush1.bf16.msra.mxu0 %v599
  %624 = vmatprep.subr.bf16.mxu0 0
  %625 = vmatpush1.bf16.msra.mxu0 0
  %626 = vmatprep.subr.bf16.mxu0 0
  %627 = vmatpush1.bf16.msra.mxu0 0
  %628 = vmatprep.subr.bf16.mxu0 0
  %629 = vmatpush1.bf16.msra.mxu0 0
  %630 = vmatprep.subr.bf16.mxu0 0
  %631 = vmatpush1.bf16.msra.mxu0 0
  %632 = vmatprep.subr.bf16.mxu0 0
  %633 = vmatpush1.bf16.msra.mxu0 0
  %634 = vmatprep.subr.bf16.mxu0 0
  %635 = vmatpush1.bf16.msra.mxu0 0
  %636 = vmatprep.subr.bf16.mxu0 0
  %637 = vmatpush1.bf16.msra.mxu0 0
  %638 = vmatprep.subr.bf16.mxu0 0
  %639 = vmatpush1.bf16.msra.mxu0 0
  %640 = vmatprep.mubr.bf16.mxu0 0
  %641 = vmatmul.mubr.bf16.gmra.mrb[0].mxu0 %v536
  %v642 = vpop.f32.mrb[0].mxu0
  %v643 = vadd.f32 %v558, %v642
  %v644 = vpop.f32.mrb[0].mxu0
  %v645 = vpop.f32.mrb[0].mxu0
  %v646 = vpop.f32.mrb[0].mxu0
  %647 = vdwg.mxu0
  %v648 = vmax.f32 %v643, 0.0
  %v649 = vpack.c.bf16 %v648, %v648
  %v650 = vld [vmem:[%s17] sm:$0xf]
  %v651 = vld [vmem:[%s17 + $0x4] sm:$0xf]
  %v652 = vld [vmem:[%s17 + $0x8] sm:$0xf]
  %v653 = vld [vmem:[%s17 + $0xc] sm:$0xf]
  %v654 = vld [vmem:[%s17 + $0x10] sm:$0xf]
  %v655 = vld [vmem:[%s17 + $0x14] sm:$0xf]
  %v656 = vld [vmem:[%s17 + $0x18] sm:$0xf]
  %v657 = vld [vmem:[%s17 + $0x1c] sm:$0xf]
  %v658 = vld [vmem:[%s17 + $0x20] sm:$0xf]
  %v659 = vld [vmem:[%s17 + $0x24] sm:$0xf]
  %v660 = vld [vmem:[%s17 + $0x28] sm:$0xf]
  %v661 = vld [vmem:[%s17 + $0x2c] sm:$0xf]
  %v662 = vld [vmem:[%s17 + $0x30] sm:$0xf]
  %v663 = vld [vmem:[%s17 + $0x34] sm:$0xf]
  %v664 = vld [vmem:[%s17 + $0x38] sm:$0xf]
  %v665 = vld [vmem:[%s17 + $0x3c] sm:$0xf]
  %v666 = vld [vmem:[%s18] sm:$0x1]
  %v668 = vlaneseq
  %v669 = vshrl.u32 %v668, 7
  %v670 = vsub.s32 0, %v669
  %v671 = vrot.slane %v666, %v670
  %v689 = vunpack.c.l.b16 %v650
  %v690 = vunpack.c.l.b16 %v651
  %v691 = vunpack.c.l.b16 %v652
  %v692 = vunpack.c.l.b16 %v653
  %v693 = vunpack.c.l.b16 %v654
  %v694 = vunpack.c.l.b16 %v655
  %v695 = vunpack.c.l.b16 %v656
  %v696 = vunpack.c.l.b16 %v657
  %v697 = vunpack.c.l.b16 %v658
  %v698 = vunpack.c.l.b16 %v659
  %v699 = vunpack.c.l.b16 %v660
  %v700 = vunpack.c.l.b16 %v661
  %v701 = vunpack.c.l.b16 %v662
  %v702 = vunpack.c.l.b16 %v663
  %v703 = vunpack.c.l.b16 %v664
  %v704 = vunpack.c.l.b16 %v665
  %v705 = vpack.c.b16 %v690, %v689
  %v706 = vpack.c.b16 %v692, %v691
  %v707 = vpack.c.b16 %v694, %v693
  %v708 = vpack.c.b16 %v696, %v695
  %v709 = vpack.c.b16 %v698, %v697
  %v710 = vpack.c.b16 %v700, %v699
  %v711 = vpack.c.b16 %v702, %v701
  %v712 = vpack.c.b16 %v704, %v703
  %721 = vmatprep.subr.bf16.mxu0 0
  %722 = vmatpush1.bf16.msra.mxu0 %v705
  %723 = vmatprep.subr.bf16.mxu0 0
  %724 = vmatpush1.bf16.msra.mxu0 %v706
  %725 = vmatprep.subr.bf16.mxu0 0
  %726 = vmatpush1.bf16.msra.mxu0 %v707
  %727 = vmatprep.subr.bf16.mxu0 0
  %728 = vmatpush1.bf16.msra.mxu0 %v708
  %729 = vmatprep.subr.bf16.mxu0 0
  %730 = vmatpush1.bf16.msra.mxu0 %v709
  %731 = vmatprep.subr.bf16.mxu0 0
  %732 = vmatpush1.bf16.msra.mxu0 %v710
  %733 = vmatprep.subr.bf16.mxu0 0
  %734 = vmatpush1.bf16.msra.mxu0 %v711
  %735 = vmatprep.subr.bf16.mxu0 0
  %736 = vmatpush1.bf16.msra.mxu0 %v712
  %737 = vmatprep.subr.bf16.mxu0 0
  %738 = vmatpush1.bf16.msra.mxu0 0
  %739 = vmatprep.subr.bf16.mxu0 0
  %740 = vmatpush1.bf16.msra.mxu0 0
  %741 = vmatprep.subr.bf16.mxu0 0
  %742 = vmatpush1.bf16.msra.mxu0 0
  %743 = vmatprep.subr.bf16.mxu0 0
  %744 = vmatpush1.bf16.msra.mxu0 0
  %745 = vmatprep.subr.bf16.mxu0 0
  %746 = vmatpush1.bf16.msra.mxu0 0
  %747 = vmatprep.subr.bf16.mxu0 0
  %748 = vmatpush1.bf16.msra.mxu0 0
  %749 = vmatprep.subr.bf16.mxu0 0
  %750 = vmatpush1.bf16.msra.mxu0 0
  %751 = vmatprep.subr.bf16.mxu0 0
  %752 = vmatpush1.bf16.msra.mxu0 0
  %753 = vmatprep.mubr.bf16.mxu0 0
  %754 = vmatmul.mubr.bf16.gmra.mrb[0].mxu0 %v649
  %v755 = vpop.f32.mrb[0].mxu0
  %v756 = vadd.f32 %v671, %v755
  %v757 = vpop.f32.mrb[0].mxu0
  %v758 = vpop.f32.mrb[0].mxu0
  %v759 = vpop.f32.mrb[0].mxu0
  %760 = vdwg.mxu0
  %v761 = vmax.f32 %v756, 0.0
  %762 = vst [vmem:[%s20] sm:$0xff] %v761
  // Predicated region
  $region72: #{gnn_forward.3} parent=0 // pred_check
    _
  $region73: #{gnn_forward.3} parent=0 // pred_check_branch
    %764 = sbr.rel (0) target = $region75
  $region74: #{gnn_forward.3} parent=0 // pred_region
    _
  $region75: #{gnn_forward.3} parent=0 // pred_fallthru
    _
  // Predicated region
  $region76: #{gnn_forward.3} parent=0 // pred_check
    _
  $region77: #{gnn_forward.3} parent=0 // pred_check_branch
    %766 = sbr.rel (0) target = $region79
  $region78: #{gnn_forward.3} parent=0 // pred_region
    _
  $region79: #{gnn_forward.3} parent=0 // pred_fallthru
    _
  // Predicated region
  $region80: #{gnn_forward.3} parent=0 // pred_check
    _
  $region81: #{gnn_forward.3} parent=0 // pred_check_branch
    %768 = sbr.rel (0) target = $region83
  $region82: #{gnn_forward.3} parent=0 // pred_region
    _
  $region83: #{gnn_forward.3} parent=0 // pred_fallthru
    _
  // Predicated region
  $region84: #{gnn_forward.3} parent=0 // pred_check
    _
  $region85: #{gnn_forward.3} parent=0 // pred_check_branch
    %770 = sbr.rel (0) target = $region87
  $region86: #{gnn_forward.3} parent=0 // pred_region
    _
  $region87: #{gnn_forward.3} parent=0 // pred_fallthru
    _

</llo_original>
